<compile_context>
chip_gen: v7x
topology: tpu7x:2x2x1
jax: 0.10.0
libtpu: 0.0.40
codegen_flags: <defaults>
</compile_context>

<pallas_src>
import jax
import jax.numpy as jnp
from jax import lax
from jax.experimental import pallas as pl
from jax.experimental.pallas import tpu as pltpu


def lstm_kernel(emb_ref, len_ref, wih_ref, whh_ref, b_ref, wlin_ref, blin_ref,
                y_ref):
    B = len_ref.shape[0]
    TB = emb_ref.shape[0]
    T = TB // B
    H2 = whh_ref.shape[0]          # 2*H_pad (lane-aligned fused hidden width)
    Hp = H2 // 2                   # H_pad
    G = wih_ref.shape[1]           # 8*H_pad (packed gate width)

    lens = len_ref[...]            # (B, 1) int32
    whh = whh_ref[...]             # (2*H_pad, 8*H_pad) block-diagonal

    # Hoisted input projection + bias: one well-shaped (T*B, E) @ (E, 8*H_pad)
    # matmul for ALL time steps and BOTH directions.
    gx = (jnp.dot(emb_ref[...], wih_ref[...],
                  preferred_element_type=jnp.float32)
          + b_ref[...])            # (T*B, 8*H_pad)

    # Lane-pattern masks from iota (no lane-concat relayout). Hidden lanes
    # [0, H_pad) are the forward direction, [H_pad, 2*H_pad) the backward
    # direction; the pattern repeats once per 128-lane gate block.
    lane_h = lax.broadcasted_iota(jnp.int32, (B, H2), 1)
    is_fwd_h = lane_h < Hp                                  # (B, 2*H_pad)
    is_bwd_h = jnp.logical_not(is_fwd_h)
    lane_g = lax.broadcasted_iota(jnp.int32, (B, G), 1)
    is_fwd_g = (lane_g % H2) < Hp                           # (B, 8*H_pad)

    # Hoisted per-step direction select (independent of the serial h-chain):
    # forward lanes consume x_t, backward lanes consume x_{T-1-t}.
    gsel = [jnp.where(is_fwd_g,
                      gx[t * B:(t + 1) * B, :],
                      gx[(T - 1 - t) * B:(T - t) * B, :])
            for t in range(T)]

    h = jnp.zeros((B, H2), jnp.float32)   # [h_fwd | h_bwd] (one vreg)
    c = jnp.zeros((B, H2), jnp.float32)   # [c_fwd | c_bwd] (one vreg)

    # Fused fwd+bwd recurrence, fully unrolled (T static & small).
    # TODO(synk): weight-stationary W_hh on the MXU (matmul_push_rhs et al.).
    for t in range(T):
        gates = gsel[t] + jnp.dot(h, whh,
                                  preferred_element_type=jnp.float32)

        # Two contiguous, 128-lane-aligned activation slabs: sigmoid (via the
        # tanh identity -> EUP only) on i|f|o, tanh on g.
        sg = 0.5 * jnp.tanh(0.5 * gates[:, :3 * H2]) + 0.5   # (B, 6*H_pad)
        gg = jnp.tanh(gates[:, 3 * H2:])                     # (B, 2*H_pad)

        i_g = sg[:, 0:H2]            # full-vreg aligned slices
        f_g = sg[:, H2:2 * H2]
        o_g = sg[:, 2 * H2:3 * H2]

        c_new = f_g * c + i_g * gg
        h_new = o_g * jnp.tanh(c_new)

        # pack_padded_sequence masking, computed per step (off the h-chain):
        # forward lanes update iff t < len[b], backward lanes iff T-1-t < len[b].
        m = (is_fwd_h & (lens > t)) | (is_bwd_h & (lens > (T - 1 - t)))
        h = jnp.where(m, h_new, h)
        c = jnp.where(m, c_new, c)

    # Final linear on concat([h_fwd, h_bwd]) — h is already lane-stacked, so a
    # single (B, 2*H_pad) @ (2*H_pad, L_pad) matmul with a lane-dense store.
    y = (jnp.dot(h, wlin_ref[...], preferred_element_type=jnp.float32)
         + blin_ref[...])
    y_ref[...] = y.astype(y_ref.dtype)


# ---------------------------------------------------------------------------
# Host-side weight packing (runs as plain XLA ops in the wrapper).
# PyTorch gate order is (i, f, g, o); we repack to (i, f, o, g) so the sigmoid
# gates form one contiguous slab, and lane-pad each direction's H to H_pad.
_GATE_ORDER = (0, 1, 3, 2)   # destination block k takes source gate _GATE_ORDER[k]


def _pack_dir_cols(wf, wb, H, H_pad):
    """(X, 4H) fwd + (X, 4H) bwd -> (X, 8*H_pad): blocks [i|f|o|g], each
    [fwd (H) | zeros | bwd (H) | zeros] so every block is 2*H_pad lanes."""
    X = wf.shape[0]
    out = jnp.zeros((X, 8 * H_pad), wf.dtype)
    for k_dst, k_src in enumerate(_GATE_ORDER):
        base = k_dst * 2 * H_pad
        out = out.at[:, base:base + H].set(wf[:, k_src * H:(k_src + 1) * H])
        out = out.at[:, base + H_pad:base + H_pad + H].set(
            wb[:, k_src * H:(k_src + 1) * H])
    return out


def _pack_whh(whh_f, whh_b, H, H_pad):
    """(H,4H) fwd + (H,4H) bwd -> block-diagonal (2*H_pad, 8*H_pad):
    fwd h rows feed only fwd gate lanes, bwd h rows only bwd gate lanes."""
    out = jnp.zeros((2 * H_pad, 8 * H_pad), whh_f.dtype)
    for k_dst, k_src in enumerate(_GATE_ORDER):
        base = k_dst * 2 * H_pad
        out = out.at[0:H, base:base + H].set(whh_f[:, k_src * H:(k_src + 1) * H])
        out = out.at[H_pad:H_pad + H, base + H_pad:base + H_pad + H].set(
            whh_b[:, k_src * H:(k_src + 1) * H])
    return out


def lstm_forward(x_ids, x_len, params):
    """x_ids: (B, T) int32 token ids (batch_first, like PyTorch); x_len: (B,)."""
    emb = params["embedding"][x_ids].astype(jnp.float32)           # (B, T, E)
    B, T, E = emb.shape
    emb_2d = jnp.transpose(emb, (1, 0, 2)).reshape(T * B, E)        # (T*B, E)
    lens = x_len.astype(jnp.int32).reshape(B, 1)

    H = params["w_hh_f"].shape[0]
    H_pad = ((H + 63) // 64) * 64          # so 2*H_pad is a multiple of 128
    L = params["b_lin"].shape[-1]
    L_pad = ((L + 127) // 128) * 128       # lane-dense output store

    w_ih = _pack_dir_cols(params["w_ih_f"], params["w_ih_b"], H, H_pad)
    b_all = _pack_dir_cols(params["b_f"], params["b_b"], H, H_pad)
    w_hh = _pack_whh(params["w_hh_f"], params["w_hh_b"], H, H_pad)

    w_lin = jnp.zeros((2 * H_pad, L_pad), jnp.float32)
    w_lin = w_lin.at[0:H, 0:L].set(params["w_lin_f"])
    w_lin = w_lin.at[H_pad:H_pad + H, 0:L].set(params["w_lin_b"])
    b_lin = jnp.zeros((1, L_pad), jnp.float32).at[:, 0:L].set(params["b_lin"])

    vmem = pl.BlockSpec(memory_space=pltpu.MemorySpace.VMEM)
    inputs = (emb_2d, lens, w_ih, w_hh, b_all, w_lin, b_lin)

    y_pad = pl.pallas_call(
        lstm_kernel,
        out_shape=jax.ShapeDtypeStruct((B, L_pad), jnp.float32),
        in_specs=[vmem] * len(inputs),
        out_specs=vmem,
    )(*inputs)
    return y_pad[:, :L]


def lstm_reference(x_ids, x_len, params):
    """Pure-JAX reference (PyTorch gate order / semantics) for correctness checking."""
    emb = params["embedding"][x_ids].astype(jnp.float32)           # (B, T, E)
    B, T, _ = emb.shape
    H = params["w_hh_f"].shape[0]

    def run(w_ih, w_hh, b, reverse):
        h = jnp.zeros((B, H), jnp.float32)
        c = jnp.zeros((B, H), jnp.float32)
        ts = range(T - 1, -1, -1) if reverse else range(T)
        for t in ts:
            x_t = emb[:, t, :]
            gates = x_t @ w_ih + h @ w_hh + b
            i = jax.nn.sigmoid(gates[:, :H])
            f = jax.nn.sigmoid(gates[:, H:2 * H])
            g = jnp.tanh(gates[:, 2 * H:3 * H])
            o = jax.nn.sigmoid(gates[:, 3 * H:])
            c_new = f * c + i * g
            h_new = o * jnp.tanh(c_new)
            mask = (x_len[:, None] > t)
            h = jnp.where(mask, h_new, h)
            c = jnp.where(mask, c_new, c)
        return h

    h_f = run(params["w_ih_f"], params["w_hh_f"], params["b_f"][0], False)
    h_b = run(params["w_ih_b"], params["w_hh_b"], params["b_b"][0], True)
    return h_f @ params["w_lin_f"] + h_b @ params["w_lin_b"] + params["b_lin"][0]


def make_params(key, vocab_size, embedding_dim, hidden_dim, label_num):
    ks = jax.random.split(key, 12)
    H, E, L = hidden_dim, embedding_dim, label_num
    s_lstm = 1.0 / jnp.sqrt(H)
    s_lin = 1.0 / jnp.sqrt(2 * H)

    def u(k, shape, s):
        return jax.random.uniform(k, shape, jnp.float32, -s, s)

    return {
        "embedding": jax.random.normal(ks[0], (vocab_size, E), jnp.float32),
        # forward direction (PyTorch weight_ih_l0 / weight_hh_l0, transposed)
        "w_ih_f": u(ks[1], (E, 4 * H), s_lstm),
        "w_hh_f": u(ks[2], (H, 4 * H), s_lstm),
        "b_f": u(ks[3], (1, 4 * H), s_lstm) + u(ks[4], (1, 4 * H), s_lstm),
        # backward direction (…_l0_reverse)
        "w_ih_b": u(ks[5], (E, 4 * H), s_lstm),
        "w_hh_b": u(ks[6], (H, 4 * H), s_lstm),
        "b_b": u(ks[7], (1, 4 * H), s_lstm) + u(ks[8], (1, 4 * H), s_lstm),
        # final linear: (2H, L) split into forward / backward halves
        "w_lin_f": u(ks[9], (H, L), s_lin),
        "w_lin_b": u(ks[10], (H, L), s_lin),
        "b_lin": u(ks[11], (1, L), s_lin),
    }


if __name__ == "__main__":
    vocab_size = 50
    embedding_dim = 16
    hidden_dim = 32
    label_num = 5
    num_layers = 2          # layers >= 1 do not affect the returned y (see notes)
    B, T = 8, 8

    key = jax.random.PRNGKey(0)
    k_par, k_ids = jax.random.split(key)
    params = make_params(k_par, vocab_size, embedding_dim, hidden_dim, label_num)

    x_ids = jax.random.randint(k_ids, (B, T), 0, vocab_size, dtype=jnp.int32)
    x_len = jnp.array([8, 5, 3, 7, 2, 6, 4, 1], dtype=jnp.int32)

    y = jax.block_until_ready(lstm_forward(x_ids, x_len, params))
    y_ref = lstm_reference(x_ids, x_len, params)

    assert y.shape == (B, label_num)
    assert jnp.allclose(y, y_ref, rtol=2e-4, atol=1e-4), (
        f"max abs err {jnp.max(jnp.abs(y - y_ref))}")

    print("KERNEL_OK")
</pallas_src>

<mosaic_0001>
module attributes {stable_mosaic.version = 11 : i64} {
  func.func @lstm_kernel(%arg0: memref<64x16xf32, #tpu.memory_space<vmem>>, %arg1: memref<8x1xi32, #tpu.memory_space<vmem>>, %arg2: memref<16x512xf32, #tpu.memory_space<vmem>>, %arg3: memref<128x512xf32, #tpu.memory_space<vmem>>, %arg4: memref<1x512xf32, #tpu.memory_space<vmem>>, %arg5: memref<128x128xf32, #tpu.memory_space<vmem>>, %arg6: memref<1x128xf32, #tpu.memory_space<vmem>>, %arg7: memref<8x128xf32, #tpu.memory_space<vmem>>) attributes {dimension_semantics = [], scalar_prefetch = 0 : i64, scratch_operands = 0 : i64, tpu.core_type = #tpu.core_type<tc>} {
    %c0 = arith.constant 0 : index
    %c0_0 = arith.constant 0 : index
    %0 = vector.load %arg1[%c0, %c0_0] : memref<8x1xi32, #tpu.memory_space<vmem>>, vector<8x1xi32>
    %c0_1 = arith.constant 0 : index
    %c0_2 = arith.constant 0 : index
    %1 = vector.load %arg3[%c0_1, %c0_2] : memref<128x512xf32, #tpu.memory_space<vmem>>, vector<128x512xf32>
    %c0_3 = arith.constant 0 : index
    %c0_4 = arith.constant 0 : index
    %2 = vector.load %arg0[%c0_3, %c0_4] : memref<64x16xf32, #tpu.memory_space<vmem>>, vector<64x16xf32>
    %c0_5 = arith.constant 0 : index
    %c0_6 = arith.constant 0 : index
    %3 = vector.load %arg2[%c0_5, %c0_6] : memref<16x512xf32, #tpu.memory_space<vmem>>, vector<16x512xf32>
    %cst = arith.constant dense<0.000000e+00> : vector<64x512xf32>
    %4 = tpu.matmul %2, %3, %cst {dimension_numbers = #tpu.dot_dimension_numbers<[1], [0], [0], [1], [0, 0, 1, 1], [], []>} : vector<64x16xf32>, vector<16x512xf32>, vector<64x512xf32> -> vector<64x512xf32>
    %c0_7 = arith.constant 0 : index
    %c0_8 = arith.constant 0 : index
    %5 = vector.load %arg4[%c0_7, %c0_8] : memref<1x512xf32, #tpu.memory_space<vmem>>, vector<1x512xf32>
    %6 = vector.broadcast %5 : vector<1x512xf32> to vector<64x512xf32>
    %7 = arith.addf %4, %6 : vector<64x512xf32>
    %8 = tpu.iota {dimensions = array<i32: 1>} : vector<8x128xi32>
    %c64_i32 = arith.constant 64 : i32
    %9 = vector.broadcast %c64_i32 : i32 to vector<8x128xi32>
    %10 = arith.cmpi slt, %8, %9 : vector<8x128xi32>
    %cst_9 = arith.constant dense<true> : vector<8x128xi1>
    %11 = arith.xori %10, %cst_9 : vector<8x128xi1>
    %12 = tpu.iota {dimensions = array<i32: 1>} : vector<8x512xi32>
    %c128_i32 = arith.constant 128 : i32
    %c0_i32 = arith.constant 0 : i32
    %13 = arith.cmpi eq, %c128_i32, %c0_i32 : i32
    %c1_i32 = arith.constant 1 : i32
    %14 = arith.select %13, %c1_i32, %c128_i32 : i32
    %15 = vector.broadcast %14 : i32 to vector<8x512xi32>
    %16 = arith.remsi %12, %15 : vector<8x512xi32>
    %c0_i32_10 = arith.constant 0 : i32
    %17 = vector.broadcast %c0_i32_10 : i32 to vector<8x512xi32>
    %18 = arith.cmpi ne, %16, %17 : vector<8x512xi32>
    %c0_i32_11 = arith.constant 0 : i32
    %19 = vector.broadcast %c0_i32_11 : i32 to vector<8x512xi32>
    %20 = arith.cmpi slt, %16, %19 : vector<8x512xi32>
    %c0_i32_12 = arith.constant 0 : i32
    %21 = arith.cmpi slt, %14, %c0_i32_12 : i32
    %22 = vector.broadcast %21 : i1 to vector<8x512xi1>
    %23 = vector.broadcast %22 : vector<8x512xi1> to vector<8x512xi1>
    %24 = arith.xori %20, %23 : vector<8x512xi1>
    %25 = arith.andi %24, %18 : vector<8x512xi1>
    %26 = vector.broadcast %14 : i32 to vector<8x512xi32>
    %27 = arith.addi %16, %26 : vector<8x512xi32>
    %28 = arith.select %25, %27, %16 : vector<8x512xi1>, vector<8x512xi32>
    %c64_i32_13 = arith.constant 64 : i32
    %29 = vector.broadcast %c64_i32_13 : i32 to vector<8x512xi32>
    %30 = arith.cmpi slt, %28, %29 : vector<8x512xi32>
    %31 = vector.extract_strided_slice %7 {offsets = [0, 0], sizes = [8, 512], strides = [1, 1]} : vector<64x512xf32> to vector<8x512xf32>
    %32 = vector.extract_strided_slice %7 {offsets = [56, 0], sizes = [8, 512], strides = [1, 1]} : vector<64x512xf32> to vector<8x512xf32>
    %33 = arith.select %30, %31, %32 : vector<8x512xi1>, vector<8x512xf32>
    %34 = vector.extract_strided_slice %7 {offsets = [8, 0], sizes = [8, 512], strides = [1, 1]} : vector<64x512xf32> to vector<8x512xf32>
    %35 = vector.extract_strided_slice %7 {offsets = [48, 0], sizes = [8, 512], strides = [1, 1]} : vector<64x512xf32> to vector<8x512xf32>
    %36 = arith.select %30, %34, %35 : vector<8x512xi1>, vector<8x512xf32>
    %37 = vector.extract_strided_slice %7 {offsets = [16, 0], sizes = [8, 512], strides = [1, 1]} : vector<64x512xf32> to vector<8x512xf32>
    %38 = vector.extract_strided_slice %7 {offsets = [40, 0], sizes = [8, 512], strides = [1, 1]} : vector<64x512xf32> to vector<8x512xf32>
    %39 = arith.select %30, %37, %38 : vector<8x512xi1>, vector<8x512xf32>
    %40 = vector.extract_strided_slice %7 {offsets = [24, 0], sizes = [8, 512], strides = [1, 1]} : vector<64x512xf32> to vector<8x512xf32>
    %41 = vector.extract_strided_slice %7 {offsets = [32, 0], sizes = [8, 512], strides = [1, 1]} : vector<64x512xf32> to vector<8x512xf32>
    %42 = arith.select %30, %40, %41 : vector<8x512xi1>, vector<8x512xf32>
    %43 = vector.extract_strided_slice %7 {offsets = [32, 0], sizes = [8, 512], strides = [1, 1]} : vector<64x512xf32> to vector<8x512xf32>
    %44 = vector.extract_strided_slice %7 {offsets = [24, 0], sizes = [8, 512], strides = [1, 1]} : vector<64x512xf32> to vector<8x512xf32>
    %45 = arith.select %30, %43, %44 : vector<8x512xi1>, vector<8x512xf32>
    %46 = vector.extract_strided_slice %7 {offsets = [40, 0], sizes = [8, 512], strides = [1, 1]} : vector<64x512xf32> to vector<8x512xf32>
    %47 = vector.extract_strided_slice %7 {offsets = [16, 0], sizes = [8, 512], strides = [1, 1]} : vector<64x512xf32> to vector<8x512xf32>
    %48 = arith.select %30, %46, %47 : vector<8x512xi1>, vector<8x512xf32>
    %49 = vector.extract_strided_slice %7 {offsets = [48, 0], sizes = [8, 512], strides = [1, 1]} : vector<64x512xf32> to vector<8x512xf32>
    %50 = vector.extract_strided_slice %7 {offsets = [8, 0], sizes = [8, 512], strides = [1, 1]} : vector<64x512xf32> to vector<8x512xf32>
    %51 = arith.select %30, %49, %50 : vector<8x512xi1>, vector<8x512xf32>
    %52 = vector.extract_strided_slice %7 {offsets = [56, 0], sizes = [8, 512], strides = [1, 1]} : vector<64x512xf32> to vector<8x512xf32>
    %53 = vector.extract_strided_slice %7 {offsets = [0, 0], sizes = [8, 512], strides = [1, 1]} : vector<64x512xf32> to vector<8x512xf32>
    %54 = arith.select %30, %52, %53 : vector<8x512xi1>, vector<8x512xf32>
    %cst_14 = arith.constant 0.000000e+00 : f32
    %55 = vector.broadcast %cst_14 : f32 to vector<8x128xf32>
    %cst_15 = arith.constant 0.000000e+00 : f32
    %56 = vector.broadcast %cst_15 : f32 to vector<8x128xf32>
    %cst_16 = arith.constant dense<0.000000e+00> : vector<8x512xf32>
    %57 = tpu.matmul %55, %1, %cst_16 {dimension_numbers = #tpu.dot_dimension_numbers<[1], [0], [0], [1], [0, 0, 1, 1], [], []>} : vector<8x128xf32>, vector<128x512xf32>, vector<8x512xf32> -> vector<8x512xf32>
    %58 = arith.addf %33, %57 : vector<8x512xf32>
    %59 = vector.extract_strided_slice %58 {offsets = [0, 0], sizes = [8, 384], strides = [1, 1]} : vector<8x512xf32> to vector<8x384xf32>
    %cst_17 = arith.constant 5.000000e-01 : f32
    %60 = vector.broadcast %cst_17 : f32 to vector<8x384xf32>
    %61 = arith.mulf %60, %59 : vector<8x384xf32>
    %62 = math.tanh %61 : vector<8x384xf32>
    %cst_18 = arith.constant 5.000000e-01 : f32
    %63 = vector.broadcast %cst_18 : f32 to vector<8x384xf32>
    %64 = arith.mulf %63, %62 : vector<8x384xf32>
    %cst_19 = arith.constant 5.000000e-01 : f32
    %65 = vector.broadcast %cst_19 : f32 to vector<8x384xf32>
    %66 = arith.addf %64, %65 : vector<8x384xf32>
    %67 = vector.extract_strided_slice %58 {offsets = [0, 384], sizes = [8, 128], strides = [1, 1]} : vector<8x512xf32> to vector<8x128xf32>
    %68 = math.tanh %67 : vector<8x128xf32>
    %69 = vector.extract_strided_slice %66 {offsets = [0, 0], sizes = [8, 128], strides = [1, 1]} : vector<8x384xf32> to vector<8x128xf32>
    %70 = vector.extract_strided_slice %66 {offsets = [0, 128], sizes = [8, 128], strides = [1, 1]} : vector<8x384xf32> to vector<8x128xf32>
    %71 = vector.extract_strided_slice %66 {offsets = [0, 256], sizes = [8, 128], strides = [1, 1]} : vector<8x384xf32> to vector<8x128xf32>
    %72 = arith.mulf %70, %56 : vector<8x128xf32>
    %73 = arith.mulf %69, %68 : vector<8x128xf32>
    %74 = arith.addf %72, %73 : vector<8x128xf32>
    %75 = math.tanh %74 : vector<8x128xf32>
    %76 = arith.mulf %71, %75 : vector<8x128xf32>
    %c0_i32_20 = arith.constant 0 : i32
    %77 = vector.broadcast %c0_i32_20 : i32 to vector<8x1xi32>
    %78 = arith.cmpi sgt, %0, %77 : vector<8x1xi32>
    %79 = vector.broadcast %78 : vector<8x1xi1> to vector<8x128xi1>
    %80 = arith.andi %10, %79 : vector<8x128xi1>
    %c7_i32 = arith.constant 7 : i32
    %81 = vector.broadcast %c7_i32 : i32 to vector<8x1xi32>
    %82 = arith.cmpi sgt, %0, %81 : vector<8x1xi32>
    %83 = vector.broadcast %82 : vector<8x1xi1> to vector<8x128xi1>
    %84 = arith.andi %11, %83 : vector<8x128xi1>
    %85 = arith.ori %80, %84 : vector<8x128xi1>
    %86 = arith.select %85, %76, %55 : vector<8x128xi1>, vector<8x128xf32>
    %87 = arith.select %85, %74, %56 : vector<8x128xi1>, vector<8x128xf32>
    %cst_21 = arith.constant dense<0.000000e+00> : vector<8x512xf32>
    %88 = tpu.matmul %86, %1, %cst_21 {dimension_numbers = #tpu.dot_dimension_numbers<[1], [0], [0], [1], [0, 0, 1, 1], [], []>} : vector<8x128xf32>, vector<128x512xf32>, vector<8x512xf32> -> vector<8x512xf32>
    %89 = arith.addf %36, %88 : vector<8x512xf32>
    %90 = vector.extract_strided_slice %89 {offsets = [0, 0], sizes = [8, 384], strides = [1, 1]} : vector<8x512xf32> to vector<8x384xf32>
    %cst_22 = arith.constant 5.000000e-01 : f32
    %91 = vector.broadcast %cst_22 : f32 to vector<8x384xf32>
    %92 = arith.mulf %91, %90 : vector<8x384xf32>
    %93 = math.tanh %92 : vector<8x384xf32>
    %cst_23 = arith.constant 5.000000e-01 : f32
    %94 = vector.broadcast %cst_23 : f32 to vector<8x384xf32>
    %95 = arith.mulf %94, %93 : vector<8x384xf32>
    %cst_24 = arith.constant 5.000000e-01 : f32
    %96 = vector.broadcast %cst_24 : f32 to vector<8x384xf32>
    %97 = arith.addf %95, %96 : vector<8x384xf32>
    %98 = vector.extract_strided_slice %89 {offsets = [0, 384], sizes = [8, 128], strides = [1, 1]} : vector<8x512xf32> to vector<8x128xf32>
    %99 = math.tanh %98 : vector<8x128xf32>
    %100 = vector.extract_strided_slice %97 {offsets = [0, 0], sizes = [8, 128], strides = [1, 1]} : vector<8x384xf32> to vector<8x128xf32>
    %101 = vector.extract_strided_slice %97 {offsets = [0, 128], sizes = [8, 128], strides = [1, 1]} : vector<8x384xf32> to vector<8x128xf32>
    %102 = vector.extract_strided_slice %97 {offsets = [0, 256], sizes = [8, 128], strides = [1, 1]} : vector<8x384xf32> to vector<8x128xf32>
    %103 = arith.mulf %101, %87 : vector<8x128xf32>
    %104 = arith.mulf %100, %99 : vector<8x128xf32>
    %105 = arith.addf %103, %104 : vector<8x128xf32>
    %106 = math.tanh %105 : vector<8x128xf32>
    %107 = arith.mulf %102, %106 : vector<8x128xf32>
    %c1_i32_25 = arith.constant 1 : i32
    %108 = vector.broadcast %c1_i32_25 : i32 to vector<8x1xi32>
    %109 = arith.cmpi sgt, %0, %108 : vector<8x1xi32>
    %110 = vector.broadcast %109 : vector<8x1xi1> to vector<8x128xi1>
    %111 = arith.andi %10, %110 : vector<8x128xi1>
    %c6_i32 = arith.constant 6 : i32
    %112 = vector.broadcast %c6_i32 : i32 to vector<8x1xi32>
    %113 = arith.cmpi sgt, %0, %112 : vector<8x1xi32>
    %114 = vector.broadcast %113 : vector<8x1xi1> to vector<8x128xi1>
    %115 = arith.andi %11, %114 : vector<8x128xi1>
    %116 = arith.ori %111, %115 : vector<8x128xi1>
    %117 = arith.select %116, %107, %86 : vector<8x128xi1>, vector<8x128xf32>
    %118 = arith.select %116, %105, %87 : vector<8x128xi1>, vector<8x128xf32>
    %cst_26 = arith.constant dense<0.000000e+00> : vector<8x512xf32>
    %119 = tpu.matmul %117, %1, %cst_26 {dimension_numbers = #tpu.dot_dimension_numbers<[1], [0], [0], [1], [0, 0, 1, 1], [], []>} : vector<8x128xf32>, vector<128x512xf32>, vector<8x512xf32> -> vector<8x512xf32>
    %120 = arith.addf %39, %119 : vector<8x512xf32>
    %121 = vector.extract_strided_slice %120 {offsets = [0, 0], sizes = [8, 384], strides = [1, 1]} : vector<8x512xf32> to vector<8x384xf32>
    %cst_27 = arith.constant 5.000000e-01 : f32
    %122 = vector.broadcast %cst_27 : f32 to vector<8x384xf32>
    %123 = arith.mulf %122, %121 : vector<8x384xf32>
    %124 = math.tanh %123 : vector<8x384xf32>
    %cst_28 = arith.constant 5.000000e-01 : f32
    %125 = vector.broadcast %cst_28 : f32 to vector<8x384xf32>
    %126 = arith.mulf %125, %124 : vector<8x384xf32>
    %cst_29 = arith.constant 5.000000e-01 : f32
    %127 = vector.broadcast %cst_29 : f32 to vector<8x384xf32>
    %128 = arith.addf %126, %127 : vector<8x384xf32>
    %129 = vector.extract_strided_slice %120 {offsets = [0, 384], sizes = [8, 128], strides = [1, 1]} : vector<8x512xf32> to vector<8x128xf32>
    %130 = math.tanh %129 : vector<8x128xf32>
    %131 = vector.extract_strided_slice %128 {offsets = [0, 0], sizes = [8, 128], strides = [1, 1]} : vector<8x384xf32> to vector<8x128xf32>
    %132 = vector.extract_strided_slice %128 {offsets = [0, 128], sizes = [8, 128], strides = [1, 1]} : vector<8x384xf32> to vector<8x128xf32>
    %133 = vector.extract_strided_slice %128 {offsets = [0, 256], sizes = [8, 128], strides = [1, 1]} : vector<8x384xf32> to vector<8x128xf32>
    %134 = arith.mulf %132, %118 : vector<8x128xf32>
    %135 = arith.mulf %131, %130 : vector<8x128xf32>
    %136 = arith.addf %134, %135 : vector<8x128xf32>
    %137 = math.tanh %136 : vector<8x128xf32>
    %138 = arith.mulf %133, %137 : vector<8x128xf32>
    %c2_i32 = arith.constant 2 : i32
    %139 = vector.broadcast %c2_i32 : i32 to vector<8x1xi32>
    %140 = arith.cmpi sgt, %0, %139 : vector<8x1xi32>
    %141 = vector.broadcast %140 : vector<8x1xi1> to vector<8x128xi1>
    %142 = arith.andi %10, %141 : vector<8x128xi1>
    %c5_i32 = arith.constant 5 : i32
    %143 = vector.broadcast %c5_i32 : i32 to vector<8x1xi32>
    %144 = arith.cmpi sgt, %0, %143 : vector<8x1xi32>
    %145 = vector.broadcast %144 : vector<8x1xi1> to vector<8x128xi1>
    %146 = arith.andi %11, %145 : vector<8x128xi1>
    %147 = arith.ori %142, %146 : vector<8x128xi1>
    %148 = arith.select %147, %138, %117 : vector<8x128xi1>, vector<8x128xf32>
    %149 = arith.select %147, %136, %118 : vector<8x128xi1>, vector<8x128xf32>
    %cst_30 = arith.constant dense<0.000000e+00> : vector<8x512xf32>
    %150 = tpu.matmul %148, %1, %cst_30 {dimension_numbers = #tpu.dot_dimension_numbers<[1], [0], [0], [1], [0, 0, 1, 1], [], []>} : vector<8x128xf32>, vector<128x512xf32>, vector<8x512xf32> -> vector<8x512xf32>
    %151 = arith.addf %42, %150 : vector<8x512xf32>
    %152 = vector.extract_strided_slice %151 {offsets = [0, 0], sizes = [8, 384], strides = [1, 1]} : vector<8x512xf32> to vector<8x384xf32>
    %cst_31 = arith.constant 5.000000e-01 : f32
    %153 = vector.broadcast %cst_31 : f32 to vector<8x384xf32>
    %154 = arith.mulf %153, %152 : vector<8x384xf32>
    %155 = math.tanh %154 : vector<8x384xf32>
    %cst_32 = arith.constant 5.000000e-01 : f32
    %156 = vector.broadcast %cst_32 : f32 to vector<8x384xf32>
    %157 = arith.mulf %156, %155 : vector<8x384xf32>
    %cst_33 = arith.constant 5.000000e-01 : f32
    %158 = vector.broadcast %cst_33 : f32 to vector<8x384xf32>
    %159 = arith.addf %157, %158 : vector<8x384xf32>
    %160 = vector.extract_strided_slice %151 {offsets = [0, 384], sizes = [8, 128], strides = [1, 1]} : vector<8x512xf32> to vector<8x128xf32>
    %161 = math.tanh %160 : vector<8x128xf32>
    %162 = vector.extract_strided_slice %159 {offsets = [0, 0], sizes = [8, 128], strides = [1, 1]} : vector<8x384xf32> to vector<8x128xf32>
    %163 = vector.extract_strided_slice %159 {offsets = [0, 128], sizes = [8, 128], strides = [1, 1]} : vector<8x384xf32> to vector<8x128xf32>
    %164 = vector.extract_strided_slice %159 {offsets = [0, 256], sizes = [8, 128], strides = [1, 1]} : vector<8x384xf32> to vector<8x128xf32>
    %165 = arith.mulf %163, %149 : vector<8x128xf32>
    %166 = arith.mulf %162, %161 : vector<8x128xf32>
    %167 = arith.addf %165, %166 : vector<8x128xf32>
    %168 = math.tanh %167 : vector<8x128xf32>
    %169 = arith.mulf %164, %168 : vector<8x128xf32>
    %c3_i32 = arith.constant 3 : i32
    %170 = vector.broadcast %c3_i32 : i32 to vector<8x1xi32>
    %171 = arith.cmpi sgt, %0, %170 : vector<8x1xi32>
    %172 = vector.broadcast %171 : vector<8x1xi1> to vector<8x128xi1>
    %173 = arith.andi %10, %172 : vector<8x128xi1>
    %c4_i32 = arith.constant 4 : i32
    %174 = vector.broadcast %c4_i32 : i32 to vector<8x1xi32>
    %175 = arith.cmpi sgt, %0, %174 : vector<8x1xi32>
    %176 = vector.broadcast %175 : vector<8x1xi1> to vector<8x128xi1>
    %177 = arith.andi %11, %176 : vector<8x128xi1>
    %178 = arith.ori %173, %177 : vector<8x128xi1>
    %179 = arith.select %178, %169, %148 : vector<8x128xi1>, vector<8x128xf32>
    %180 = arith.select %178, %167, %149 : vector<8x128xi1>, vector<8x128xf32>
    %cst_34 = arith.constant dense<0.000000e+00> : vector<8x512xf32>
    %181 = tpu.matmul %179, %1, %cst_34 {dimension_numbers = #tpu.dot_dimension_numbers<[1], [0], [0], [1], [0, 0, 1, 1], [], []>} : vector<8x128xf32>, vector<128x512xf32>, vector<8x512xf32> -> vector<8x512xf32>
    %182 = arith.addf %45, %181 : vector<8x512xf32>
    %183 = vector.extract_strided_slice %182 {offsets = [0, 0], sizes = [8, 384], strides = [1, 1]} : vector<8x512xf32> to vector<8x384xf32>
    %cst_35 = arith.constant 5.000000e-01 : f32
    %184 = vector.broadcast %cst_35 : f32 to vector<8x384xf32>
    %185 = arith.mulf %184, %183 : vector<8x384xf32>
    %186 = math.tanh %185 : vector<8x384xf32>
    %cst_36 = arith.constant 5.000000e-01 : f32
    %187 = vector.broadcast %cst_36 : f32 to vector<8x384xf32>
    %188 = arith.mulf %187, %186 : vector<8x384xf32>
    %cst_37 = arith.constant 5.000000e-01 : f32
    %189 = vector.broadcast %cst_37 : f32 to vector<8x384xf32>
    %190 = arith.addf %188, %189 : vector<8x384xf32>
    %191 = vector.extract_strided_slice %182 {offsets = [0, 384], sizes = [8, 128], strides = [1, 1]} : vector<8x512xf32> to vector<8x128xf32>
    %192 = math.tanh %191 : vector<8x128xf32>
    %193 = vector.extract_strided_slice %190 {offsets = [0, 0], sizes = [8, 128], strides = [1, 1]} : vector<8x384xf32> to vector<8x128xf32>
    %194 = vector.extract_strided_slice %190 {offsets = [0, 128], sizes = [8, 128], strides = [1, 1]} : vector<8x384xf32> to vector<8x128xf32>
    %195 = vector.extract_strided_slice %190 {offsets = [0, 256], sizes = [8, 128], strides = [1, 1]} : vector<8x384xf32> to vector<8x128xf32>
    %196 = arith.mulf %194, %180 : vector<8x128xf32>
    %197 = arith.mulf %193, %192 : vector<8x128xf32>
    %198 = arith.addf %196, %197 : vector<8x128xf32>
    %199 = math.tanh %198 : vector<8x128xf32>
    %200 = arith.mulf %195, %199 : vector<8x128xf32>
    %c4_i32_38 = arith.constant 4 : i32
    %201 = vector.broadcast %c4_i32_38 : i32 to vector<8x1xi32>
    %202 = arith.cmpi sgt, %0, %201 : vector<8x1xi32>
    %203 = vector.broadcast %202 : vector<8x1xi1> to vector<8x128xi1>
    %204 = arith.andi %10, %203 : vector<8x128xi1>
    %c3_i32_39 = arith.constant 3 : i32
    %205 = vector.broadcast %c3_i32_39 : i32 to vector<8x1xi32>
    %206 = arith.cmpi sgt, %0, %205 : vector<8x1xi32>
    %207 = vector.broadcast %206 : vector<8x1xi1> to vector<8x128xi1>
    %208 = arith.andi %11, %207 : vector<8x128xi1>
    %209 = arith.ori %204, %208 : vector<8x128xi1>
    %210 = arith.select %209, %200, %179 : vector<8x128xi1>, vector<8x128xf32>
    %211 = arith.select %209, %198, %180 : vector<8x128xi1>, vector<8x128xf32>
    %cst_40 = arith.constant dense<0.000000e+00> : vector<8x512xf32>
    %212 = tpu.matmul %210, %1, %cst_40 {dimension_numbers = #tpu.dot_dimension_numbers<[1], [0], [0], [1], [0, 0, 1, 1], [], []>} : vector<8x128xf32>, vector<128x512xf32>, vector<8x512xf32> -> vector<8x512xf32>
    %213 = arith.addf %48, %212 : vector<8x512xf32>
    %214 = vector.extract_strided_slice %213 {offsets = [0, 0], sizes = [8, 384], strides = [1, 1]} : vector<8x512xf32> to vector<8x384xf32>
    %cst_41 = arith.constant 5.000000e-01 : f32
    %215 = vector.broadcast %cst_41 : f32 to vector<8x384xf32>
    %216 = arith.mulf %215, %214 : vector<8x384xf32>
    %217 = math.tanh %216 : vector<8x384xf32>
    %cst_42 = arith.constant 5.000000e-01 : f32
    %218 = vector.broadcast %cst_42 : f32 to vector<8x384xf32>
    %219 = arith.mulf %218, %217 : vector<8x384xf32>
    %cst_43 = arith.constant 5.000000e-01 : f32
    %220 = vector.broadcast %cst_43 : f32 to vector<8x384xf32>
    %221 = arith.addf %219, %220 : vector<8x384xf32>
    %222 = vector.extract_strided_slice %213 {offsets = [0, 384], sizes = [8, 128], strides = [1, 1]} : vector<8x512xf32> to vector<8x128xf32>
    %223 = math.tanh %222 : vector<8x128xf32>
    %224 = vector.extract_strided_slice %221 {offsets = [0, 0], sizes = [8, 128], strides = [1, 1]} : vector<8x384xf32> to vector<8x128xf32>
    %225 = vector.extract_strided_slice %221 {offsets = [0, 128], sizes = [8, 128], strides = [1, 1]} : vector<8x384xf32> to vector<8x128xf32>
    %226 = vector.extract_strided_slice %221 {offsets = [0, 256], sizes = [8, 128], strides = [1, 1]} : vector<8x384xf32> to vector<8x128xf32>
    %227 = arith.mulf %225, %211 : vector<8x128xf32>
    %228 = arith.mulf %224, %223 : vector<8x128xf32>
    %229 = arith.addf %227, %228 : vector<8x128xf32>
    %230 = math.tanh %229 : vector<8x128xf32>
    %231 = arith.mulf %226, %230 : vector<8x128xf32>
    %c5_i32_44 = arith.constant 5 : i32
    %232 = vector.broadcast %c5_i32_44 : i32 to vector<8x1xi32>
    %233 = arith.cmpi sgt, %0, %232 : vector<8x1xi32>
    %234 = vector.broadcast %233 : vector<8x1xi1> to vector<8x128xi1>
    %235 = arith.andi %10, %234 : vector<8x128xi1>
    %c2_i32_45 = arith.constant 2 : i32
    %236 = vector.broadcast %c2_i32_45 : i32 to vector<8x1xi32>
    %237 = arith.cmpi sgt, %0, %236 : vector<8x1xi32>
    %238 = vector.broadcast %237 : vector<8x1xi1> to vector<8x128xi1>
    %239 = arith.andi %11, %238 : vector<8x128xi1>
    %240 = arith.ori %235, %239 : vector<8x128xi1>
    %241 = arith.select %240, %231, %210 : vector<8x128xi1>, vector<8x128xf32>
    %242 = arith.select %240, %229, %211 : vector<8x128xi1>, vector<8x128xf32>
    %cst_46 = arith.constant dense<0.000000e+00> : vector<8x512xf32>
    %243 = tpu.matmul %241, %1, %cst_46 {dimension_numbers = #tpu.dot_dimension_numbers<[1], [0], [0], [1], [0, 0, 1, 1], [], []>} : vector<8x128xf32>, vector<128x512xf32>, vector<8x512xf32> -> vector<8x512xf32>
    %244 = arith.addf %51, %243 : vector<8x512xf32>
    %245 = vector.extract_strided_slice %244 {offsets = [0, 0], sizes = [8, 384], strides = [1, 1]} : vector<8x512xf32> to vector<8x384xf32>
    %cst_47 = arith.constant 5.000000e-01 : f32
    %246 = vector.broadcast %cst_47 : f32 to vector<8x384xf32>
    %247 = arith.mulf %246, %245 : vector<8x384xf32>
    %248 = math.tanh %247 : vector<8x384xf32>
    %cst_48 = arith.constant 5.000000e-01 : f32
    %249 = vector.broadcast %cst_48 : f32 to vector<8x384xf32>
    %250 = arith.mulf %249, %248 : vector<8x384xf32>
    %cst_49 = arith.constant 5.000000e-01 : f32
    %251 = vector.broadcast %cst_49 : f32 to vector<8x384xf32>
    %252 = arith.addf %250, %251 : vector<8x384xf32>
    %253 = vector.extract_strided_slice %244 {offsets = [0, 384], sizes = [8, 128], strides = [1, 1]} : vector<8x512xf32> to vector<8x128xf32>
    %254 = math.tanh %253 : vector<8x128xf32>
    %255 = vector.extract_strided_slice %252 {offsets = [0, 0], sizes = [8, 128], strides = [1, 1]} : vector<8x384xf32> to vector<8x128xf32>
    %256 = vector.extract_strided_slice %252 {offsets = [0, 128], sizes = [8, 128], strides = [1, 1]} : vector<8x384xf32> to vector<8x128xf32>
    %257 = vector.extract_strided_slice %252 {offsets = [0, 256], sizes = [8, 128], strides = [1, 1]} : vector<8x384xf32> to vector<8x128xf32>
    %258 = arith.mulf %256, %242 : vector<8x128xf32>
    %259 = arith.mulf %255, %254 : vector<8x128xf32>
    %260 = arith.addf %258, %259 : vector<8x128xf32>
    %261 = math.tanh %260 : vector<8x128xf32>
    %262 = arith.mulf %257, %261 : vector<8x128xf32>
    %c6_i32_50 = arith.constant 6 : i32
    %263 = vector.broadcast %c6_i32_50 : i32 to vector<8x1xi32>
    %264 = arith.cmpi sgt, %0, %263 : vector<8x1xi32>
    %265 = vector.broadcast %264 : vector<8x1xi1> to vector<8x128xi1>
    %266 = arith.andi %10, %265 : vector<8x128xi1>
    %c1_i32_51 = arith.constant 1 : i32
    %267 = vector.broadcast %c1_i32_51 : i32 to vector<8x1xi32>
    %268 = arith.cmpi sgt, %0, %267 : vector<8x1xi32>
    %269 = vector.broadcast %268 : vector<8x1xi1> to vector<8x128xi1>
    %270 = arith.andi %11, %269 : vector<8x128xi1>
    %271 = arith.ori %266, %270 : vector<8x128xi1>
    %272 = arith.select %271, %262, %241 : vector<8x128xi1>, vector<8x128xf32>
    %273 = arith.select %271, %260, %242 : vector<8x128xi1>, vector<8x128xf32>
    %cst_52 = arith.constant dense<0.000000e+00> : vector<8x512xf32>
    %274 = tpu.matmul %272, %1, %cst_52 {dimension_numbers = #tpu.dot_dimension_numbers<[1], [0], [0], [1], [0, 0, 1, 1], [], []>} : vector<8x128xf32>, vector<128x512xf32>, vector<8x512xf32> -> vector<8x512xf32>
    %275 = arith.addf %54, %274 : vector<8x512xf32>
    %276 = vector.extract_strided_slice %275 {offsets = [0, 0], sizes = [8, 384], strides = [1, 1]} : vector<8x512xf32> to vector<8x384xf32>
    %cst_53 = arith.constant 5.000000e-01 : f32
    %277 = vector.broadcast %cst_53 : f32 to vector<8x384xf32>
    %278 = arith.mulf %277, %276 : vector<8x384xf32>
    %279 = math.tanh %278 : vector<8x384xf32>
    %cst_54 = arith.constant 5.000000e-01 : f32
    %280 = vector.broadcast %cst_54 : f32 to vector<8x384xf32>
    %281 = arith.mulf %280, %279 : vector<8x384xf32>
    %cst_55 = arith.constant 5.000000e-01 : f32
    %282 = vector.broadcast %cst_55 : f32 to vector<8x384xf32>
    %283 = arith.addf %281, %282 : vector<8x384xf32>
    %284 = vector.extract_strided_slice %275 {offsets = [0, 384], sizes = [8, 128], strides = [1, 1]} : vector<8x512xf32> to vector<8x128xf32>
    %285 = math.tanh %284 : vector<8x128xf32>
    %286 = vector.extract_strided_slice %283 {offsets = [0, 0], sizes = [8, 128], strides = [1, 1]} : vector<8x384xf32> to vector<8x128xf32>
    %287 = vector.extract_strided_slice %283 {offsets = [0, 128], sizes = [8, 128], strides = [1, 1]} : vector<8x384xf32> to vector<8x128xf32>
    %288 = vector.extract_strided_slice %283 {offsets = [0, 256], sizes = [8, 128], strides = [1, 1]} : vector<8x384xf32> to vector<8x128xf32>
    %289 = arith.mulf %287, %273 : vector<8x128xf32>
    %290 = arith.mulf %286, %285 : vector<8x128xf32>
    %291 = arith.addf %289, %290 : vector<8x128xf32>
    %292 = math.tanh %291 : vector<8x128xf32>
    %293 = arith.mulf %288, %292 : vector<8x128xf32>
    %c7_i32_56 = arith.constant 7 : i32
    %294 = vector.broadcast %c7_i32_56 : i32 to vector<8x1xi32>
    %295 = arith.cmpi sgt, %0, %294 : vector<8x1xi32>
    %296 = vector.broadcast %295 : vector<8x1xi1> to vector<8x128xi1>
    %297 = arith.andi %10, %296 : vector<8x128xi1>
    %c0_i32_57 = arith.constant 0 : i32
    %298 = vector.broadcast %c0_i32_57 : i32 to vector<8x1xi32>
    %299 = arith.cmpi sgt, %0, %298 : vector<8x1xi32>
    %300 = vector.broadcast %299 : vector<8x1xi1> to vector<8x128xi1>
    %301 = arith.andi %11, %300 : vector<8x128xi1>
    %302 = arith.ori %297, %301 : vector<8x128xi1>
    %303 = arith.select %302, %293, %272 : vector<8x128xi1>, vector<8x128xf32>
    %c0_58 = arith.constant 0 : index
    %c0_59 = arith.constant 0 : index
    %304 = vector.load %arg5[%c0_58, %c0_59] : memref<128x128xf32, #tpu.memory_space<vmem>>, vector<128x128xf32>
    %cst_60 = arith.constant dense<0.000000e+00> : vector<8x128xf32>
    %305 = tpu.matmul %303, %304, %cst_60 {dimension_numbers = #tpu.dot_dimension_numbers<[1], [0], [0], [1], [0, 0, 1, 1], [], []>} : vector<8x128xf32>, vector<128x128xf32>, vector<8x128xf32> -> vector<8x128xf32>
    %c0_61 = arith.constant 0 : index
    %c0_62 = arith.constant 0 : index
    %306 = vector.load %arg6[%c0_61, %c0_62] : memref<1x128xf32, #tpu.memory_space<vmem>>, vector<1x128xf32>
    %307 = vector.broadcast %306 : vector<1x128xf32> to vector<8x128xf32>
    %308 = arith.addf %305, %307 : vector<8x128xf32>
    %c0_63 = arith.constant 0 : index
    %c0_64 = arith.constant 0 : index
    %309 = vector.load %arg7[%c0_63, %c0_64] : memref<8x128xf32, #tpu.memory_space<vmem>>, vector<8x128xf32>
    tpu.vector_store %arg7[%c0_63, %c0_64], %308 {strides = array<i32>} : memref<8x128xf32, #tpu.memory_space<vmem>>, vector<8x128xf32>,
    return
  }
}

</mosaic_0001>

<llo_original>
// kernel: tpu_custom_call.1
$region0: #{tpu_custom_call.1}
  #allocation0 [shape = 'u32[]', space=smem, size = 0x4, offset = 0x4, fixed_abs, tag = 'smem constant byte address 0x4 - core index']
  #allocation1 [shape = 'u32[144,128]{1,0:T(1,128)}', space=vmem, size = 0x12000, scoped, tag = 'internal scratch']
  %s0 = inlined_call_operand.vmem [shape: f32[64,16], index: 0, kind: input, shape index: {}]
  %s1 = inlined_call_operand.vmem [shape: s32[8,1], index: 1, kind: input, shape index: {}]
  %s2 = inlined_call_operand.vmem [shape: f32[16,512], index: 2, kind: input, shape index: {}]
  %s3 = inlined_call_operand.hbm [shape: f32[128,512], index: 3, kind: input, shape index: {}]
  %s4 = inlined_call_operand.vmem [shape: f32[1,512], index: 4, kind: input, shape index: {}]
  %s5 = inlined_call_operand.hbm [shape: f32[128,128], index: 5, kind: input, shape index: {}]
  %s6 = inlined_call_operand.vmem [shape: f32[1,128], index: 6, kind: input, shape index: {}]
  %s7 = inlined_call_operand.hbm [shape: f32[8,128], index: 7, kind: output, shape index: {}]
  %s8 = sld [smem:[#allocation0]]
  $region46: #{tpu_custom_call.1} parent=0
    _
  %s10 = ssub.s32 1, %s8
  %s11 = scalar_select 0, %s10, %s8
  $region1: #{tpu_custom_call.1} parent=0
    #allocation2 [shape = 'u8[262144]{0}', space=vmem, size = 0x40000, scoped, tag = 'input window, operand 3, single buffered']
    #allocation3 [shape = 's32[1]{0}', space=sflag, size = 0x4, scoped, tag = 'scoped memory for tpu_custom_call.1']
    #allocation4 [shape = 's32[1]{0}', space=sflag, size = 0x4, scoped, tag = 'scoped memory for tpu_custom_call.1']
    #allocation5 [shape = 'u8[65536]{0}', space=vmem, size = 0x10000, scoped, tag = 'input window, operand 5, single buffered']
    #allocation6 [shape = 's32[1]{0}', space=sflag, size = 0x4, scoped, tag = 'scoped memory for tpu_custom_call.1']
    #allocation7 [shape = 'u8[4096]{0}', space=vmem, size = 0x1000, scoped, tag = 'output window, operand 0, single buffered']
    %12 = vsyncpa [#allocation3], 0
    %13 = vsyncpa [#allocation6], 0
    %14 = vsyncpa [#allocation4], 0
    // Predicated region
    $region2: #{tpu_custom_call.1} parent=1 // pred_check
      _
    $region3: #{tpu_custom_call.1} parent=1 // pred_check_branch
      %16 = sbr.rel (0) target = $region5
    $region4: #{tpu_custom_call.1} parent=1 // pred_region
      _
    $region5: #{tpu_custom_call.1} parent=1 // pred_fallthru
      _
    // Predicated region
    $region6: #{tpu_custom_call.1} parent=1 // pred_check
      _
    $region7: #{tpu_custom_call.1} parent=1 // pred_check_branch
      %18 = sbr.rel (0) target = $region9
    $region8: #{tpu_custom_call.1} parent=1 // pred_region
      _
    $region9: #{tpu_custom_call.1} parent=1 // pred_fallthru
      _
    // Predicated region
    $region10: #{tpu_custom_call.1} parent=1 // pred_check
      _
    $region11: #{tpu_custom_call.1} parent=1 // pred_check_branch
      %20 = sbr.rel (0) target = $region13
    $region12: #{tpu_custom_call.1} parent=1 // pred_region
      _
    $region13: #{tpu_custom_call.1} parent=1 // pred_fallthru
      _
    // Predicated region
    $region14: #{tpu_custom_call.1} parent=1 // pred_check
      _
    $region15: #{tpu_custom_call.1} parent=1 // pred_check_branch
      %22 = sbr.rel (0) target = $region17
    $region16: #{tpu_custom_call.1} parent=1 // pred_region
      %s24 = ssub.s32 8192, 8192
      %25 = vsyncadd [#allocation3], %s24
      %s26 = sshll.u32 [#allocation2], 4
      %s27 = int_to_ptr.vmem [resolvable:$true] %s26
      %32 = dma.hbm_to_vmem [thread:$0]  %s3, 8192, %s27, [#allocation3], 512, 512, 32
    $region17: #{tpu_custom_call.1} parent=1 // pred_fallthru
      _
    // Predicated region
    $region18: #{tpu_custom_call.1} parent=1 // pred_check
      _
    $region19: #{tpu_custom_call.1} parent=1 // pred_check_branch
      %34 = sbr.rel (0) target = $region21
    $region20: #{tpu_custom_call.1} parent=1 // pred_region
      _
    $region21: #{tpu_custom_call.1} parent=1 // pred_fallthru
      _
    // Predicated region
    $region22: #{tpu_custom_call.1} parent=1 // pred_check
      _
    $region23: #{tpu_custom_call.1} parent=1 // pred_check_branch
      %36 = sbr.rel (0) target = $region25
    $region24: #{tpu_custom_call.1} parent=1 // pred_region
      %s38 = ssub.s32 2048, 2048
      %39 = vsyncadd [#allocation6], %s38
      %s40 = sshll.u32 [#allocation5], 4
      %s41 = int_to_ptr.vmem [resolvable:$true] %s40
      %46 = dma.hbm_to_vmem [thread:$0]  %s5, 2048, %s41, [#allocation6], 128, 128, 8
    $region25: #{tpu_custom_call.1} parent=1 // pred_fallthru
      _
    // Predicated region
    $region26: #{tpu_custom_call.1} parent=1 // pred_check
      _
    $region27: #{tpu_custom_call.1} parent=1 // pred_check_branch
      %48 = sbr.rel (0) target = $region29
    $region28: #{tpu_custom_call.1} parent=1 // pred_region
      _
    $region29: #{tpu_custom_call.1} parent=1 // pred_fallthru
      _
    // Predicated region
    $region30: #{tpu_custom_call.1} parent=1 // pred_check
      _
    $region31: #{tpu_custom_call.1} parent=1 // pred_check_branch
      %50 = sbr.rel (0) target = $region33
    $region32: #{tpu_custom_call.1} parent=1 // pred_region
      %51 = dma.done [#allocation3], 8192
    $region33: #{tpu_custom_call.1} parent=1 // pred_fallthru
      _
    // Predicated region
    $region34: #{tpu_custom_call.1} parent=1 // pred_check
      _
    $region35: #{tpu_custom_call.1} parent=1 // pred_check_branch
      %53 = sbr.rel (0) target = $region37
    $region36: #{tpu_custom_call.1} parent=1 // pred_region
      %54 = dma.done [#allocation6], 2048
    $region37: #{tpu_custom_call.1} parent=1 // pred_fallthru
      _
    %v55 = vld [vmem:[%s1] sm:$0xff]
    %v56 = vld [vmem:[#allocation2] sm:$0xff]
    %v57 = vld [vmem:[#allocation2 + $0x8] sm:$0xff]
    %v58 = vld [vmem:[#allocation2 + $0x10] sm:$0xff]
    %v59 = vld [vmem:[#allocation2 + $0x18] sm:$0xff]
    %v60 = vld [vmem:[#allocation2 + $0x20] sm:$0xff]
    %v61 = vld [vmem:[#allocation2 + $0x28] sm:$0xff]
    %v62 = vld [vmem:[#allocation2 + $0x30] sm:$0xff]
    %v63 = vld [vmem:[#allocation2 + $0x38] sm:$0xff]
    %v64 = vld [vmem:[#allocation2 + $0x40] sm:$0xff]
    %v65 = vld [vmem:[#allocation2 + $0x48] sm:$0xff]
    %v66 = vld [vmem:[#allocation2 + $0x50] sm:$0xff]
    %v67 = vld [vmem:[#allocation2 + $0x58] sm:$0xff]
    %v68 = vld [vmem:[#allocation2 + $0x60] sm:$0xff]
    %v69 = vld [vmem:[#allocation2 + $0x68] sm:$0xff]
    %v70 = vld [vmem:[#allocation2 + $0x70] sm:$0xff]
    %v71 = vld [vmem:[#allocation2 + $0x78] sm:$0xff]
    %v72 = vld [vmem:[#allocation2 + $0x80] sm:$0xff]
    %v73 = vld [vmem:[#allocation2 + $0x88] sm:$0xff]
    %v74 = vld [vmem:[#allocation2 + $0x90] sm:$0xff]
    %v75 = vld [vmem:[#allocation2 + $0x98] sm:$0xff]
    %v76 = vld [vmem:[#allocation2 + $0xa0] sm:$0xff]
    %v77 = vld [vmem:[#allocation2 + $0xa8] sm:$0xff]
    %v78 = vld [vmem:[#allocation2 + $0xb0] sm:$0xff]
    %v79 = vld [vmem:[#allocation2 + $0xb8] sm:$0xff]
    %v80 = vld [vmem:[#allocation2 + $0xc0] sm:$0xff]
    %v81 = vld [vmem:[#allocation2 + $0xc8] sm:$0xff]
    %v82 = vld [vmem:[#allocation2 + $0xd0] sm:$0xff]
    %v83 = vld [vmem:[#allocation2 + $0xd8] sm:$0xff]
    %v84 = vld [vmem:[#allocation2 + $0xe0] sm:$0xff]
    %v85 = vld [vmem:[#allocation2 + $0xe8] sm:$0xff]
    %v86 = vld [vmem:[#allocation2 + $0xf0] sm:$0xff]
    %v87 = vld [vmem:[#allocation2 + $0xf8] sm:$0xff]
    %v88 = vld [vmem:[#allocation2 + $0x100] sm:$0xff]
    %v89 = vld [vmem:[#allocation2 + $0x108] sm:$0xff]
    %v90 = vld [vmem:[#allocation2 + $0x110] sm:$0xff]
    %v91 = vld [vmem:[#allocation2 + $0x118] sm:$0xff]
    %v92 = vld [vmem:[#allocation2 + $0x120] sm:$0xff]
    %v93 = vld [vmem:[#allocation2 + $0x128] sm:$0xff]
    %v94 = vld [vmem:[#allocation2 + $0x130] sm:$0xff]
    %v95 = vld [vmem:[#allocation2 + $0x138] sm:$0xff]
    %v96 = vld [vmem:[#allocation2 + $0x140] sm:$0xff]
    %v97 = vld [vmem:[#allocation2 + $0x148] sm:$0xff]
    %v98 = vld [vmem:[#allocation2 + $0x150] sm:$0xff]
    %v99 = vld [vmem:[#allocation2 + $0x158] sm:$0xff]
    %v100 = vld [vmem:[#allocation2 + $0x160] sm:$0xff]
    %v101 = vld [vmem:[#allocation2 + $0x168] sm:$0xff]
    %v102 = vld [vmem:[#allocation2 + $0x170] sm:$0xff]
    %v103 = vld [vmem:[#allocation2 + $0x178] sm:$0xff]
    %v104 = vld [vmem:[#allocation2 + $0x180] sm:$0xff]
    %v105 = vld [vmem:[#allocation2 + $0x188] sm:$0xff]
    %v106 = vld [vmem:[#allocation2 + $0x190] sm:$0xff]
    %v107 = vld [vmem:[#allocation2 + $0x198] sm:$0xff]
    %v108 = vld [vmem:[#allocation2 + $0x1a0] sm:$0xff]
    %v109 = vld [vmem:[#allocation2 + $0x1a8] sm:$0xff]
    %v110 = vld [vmem:[#allocation2 + $0x1b0] sm:$0xff]
    %v111 = vld [vmem:[#allocation2 + $0x1b8] sm:$0xff]
    %v112 = vld [vmem:[#allocation2 + $0x1c0] sm:$0xff]
    %v113 = vld [vmem:[#allocation2 + $0x1c8] sm:$0xff]
    %v114 = vld [vmem:[#allocation2 + $0x1d0] sm:$0xff]
    %v115 = vld [vmem:[#allocation2 + $0x1d8] sm:$0xff]
    %v116 = vld [vmem:[#allocation2 + $0x1e0] sm:$0xff]
    %v117 = vld [vmem:[#allocation2 + $0x1e8] sm:$0xff]
    %v118 = vld [vmem:[#allocation2 + $0x1f0] sm:$0xff]
    %v119 = vld [vmem:[#allocation2 + $0x1f8] sm:$0xff]
    %v120 = vld [vmem:[%s0] sm:$0xff]
    %v121 = vld [vmem:[%s0 + $0x8] sm:$0xff]
    %v122 = vld [vmem:[%s0 + $0x10] sm:$0xff]
    %v123 = vld [vmem:[%s0 + $0x18] sm:$0xff]
    %v124 = vld [vmem:[%s0 + $0x20] sm:$0xff]
    %v125 = vld [vmem:[%s0 + $0x28] sm:$0xff]
    %v126 = vld [vmem:[%s0 + $0x30] sm:$0xff]
    %v127 = vld [vmem:[%s0 + $0x38] sm:$0xff]
    %v128 = vld [vmem:[%s2] sm:$0xff]
    %v129 = vld [vmem:[%s2 + $0x8] sm:$0xff]
    %v130 = vld [vmem:[%s2 + $0x10] sm:$0xff]
    %v131 = vld [vmem:[%s2 + $0x18] sm:$0xff]
    %v132 = vld [vmem:[%s2 + $0x20] sm:$0xff]
    %v133 = vld [vmem:[%s2 + $0x28] sm:$0xff]
    %v134 = vld [vmem:[%s2 + $0x30] sm:$0xff]
    %v135 = vld [vmem:[%s2 + $0x38] sm:$0xff]
    %v136 = vld [vmem:[%s4] sm:$0xf]
    %v138 = vlaneseq
    %v139 = vshrl.u32 %v138, 7
    %v140 = vsub.s32 0, %v139
    %v141 = vrot.slane %v136, %v140
    %v142 = vlaneseq
    %v143 = vshrl.u32 %v142, 7
    %v144 = vsub.s32 1, %v143
    %v145 = vrot.slane %v136, %v144
    %v146 = vlaneseq
    %v147 = vshrl.u32 %v146, 7
    %v148 = vsub.s32 2, %v147
    %v149 = vrot.slane %v136, %v148
    %v150 = vlaneseq
    %v151 = vshrl.u32 %v150, 7
    %v152 = vsub.s32 3, %v151
    %v153 = vrot.slane %v136, %v152
    %vm158 = vcmask 130048
    %v160 = vsel %vm158, %v120, 0
    %v163 = vsel %vm158, %v121, 0
    %v166 = vsel %vm158, %v122, 0
    %v169 = vsel %vm158, %v123, 0
    %v172 = vsel %vm158, %v124, 0
    %v175 = vsel %vm158, %v125, 0
    %v178 = vsel %vm158, %v126, 0
    %v181 = vsel %vm158, %v127, 0
    %183 = vmatprep.subr.mxu0 %v129
    %184 = vmatpush1.msra.mxu0 %v128
    %185 = vmatprep.subr.mxu0 %v133
    %186 = vmatpush1.msra.mxu0 %v132
    %187 = vmatprep.subr.mxu0 0.0
    %188 = vmatpush1.msra.mxu0 0.0
    %189 = vmatprep.subr.mxu0 0.0
    %190 = vmatpush1.msra.mxu0 0.0
    %191 = vmatprep.subr.mxu0 0.0
    %192 = vmatpush1.msra.mxu0 0.0
    %193 = vmatprep.subr.mxu0 0.0
    %194 = vmatpush1.msra.mxu0 0.0
    %195 = vmatprep.subr.mxu0 0.0
    %196 = vmatpush1.msra.mxu0 0.0
    %197 = vmatprep.subr.mxu0 0.0
    %198 = vmatpush1.msra.mxu0 0.0
    %199 = vmatprep.subr.mxu0 0.0
    %200 = vmatpush1.msra.mxu0 0.0
    %201 = vmatprep.subr.mxu0 0.0
    %202 = vmatpush1.msra.mxu0 0.0
    %203 = vmatprep.subr.mxu0 0.0
    %204 = vmatpush1.msra.mxu0 0.0
    %205 = vmatprep.subr.mxu0 0.0
    %206 = vmatpush1.msra.mxu0 0.0
    %207 = vmatprep.subr.mxu0 0.0
    %208 = vmatpush1.msra.mxu0 0.0
    %209 = vmatprep.subr.mxu0 0.0
    %210 = vmatpush1.msra.mxu0 0.0
    %211 = vmatprep.subr.mxu0 0.0
    %212 = vmatpush1.msra.mxu0 0.0
    %213 = vmatprep.subr.mxu0 0.0
    %214 = vmatpush1.msra.mxu0 0.0
    %215 = vmatprep.subr.mxu0 0.0
    %216 = vmatpush1.msra.mxu0 0.0
    %217 = vmatprep.subr.mxu0 0.0
    %218 = vmatpush1.msra.mxu0 0.0
    %219 = vmatprep.subr.mxu0 0.0
    %220 = vmatpush1.msra.mxu0 0.0
    %221 = vmatprep.subr.mxu0 0.0
    %222 = vmatpush1.msra.mxu0 0.0
    %223 = vmatprep.subr.mxu0 0.0
    %224 = vmatpush1.msra.mxu0 0.0
    %225 = vmatprep.subr.mxu0 0.0
    %226 = vmatpush1.msra.mxu0 0.0
    %227 = vmatprep.subr.mxu0 0.0
    %228 = vmatpush1.msra.mxu0 0.0
    %229 = vmatprep.subr.mxu0 0.0
    %230 = vmatpush1.msra.mxu0 0.0
    %231 = vmatprep.subr.mxu0 0.0
    %232 = vmatpush1.msra.mxu0 0.0
    %233 = vmatprep.subr.mxu0 0.0
    %234 = vmatpush1.msra.mxu0 0.0
    %235 = vmatprep.subr.mxu0 0.0
    %236 = vmatpush1.msra.mxu0 0.0
    %237 = vmatprep.subr.mxu0 0.0
    %238 = vmatpush1.msra.mxu0 0.0
    %239 = vmatprep.subr.mxu0 0.0
    %240 = vmatpush1.msra.mxu0 0.0
    %241 = vmatprep.subr.mxu0 0.0
    %242 = vmatpush1.msra.mxu0 0.0
    %243 = vmatprep.subr.mxu0 0.0
    %244 = vmatpush1.msra.mxu0 0.0
    %245 = vmatprep.subr.mxu0 0.0
    %246 = vmatpush1.msra.mxu0 0.0
    %247 = vmatprep.mubr.f32.mxu0 0.0
    %248 = vmatmul.mubr.f32.gmra.mrb[0].mxu0 %v160
    %v249 = vpop.f32.mrb[0].mxu0
    %v250 = vadd.f32 %v141, %v249
    %v251 = vpop.f32.mrb[0].mxu0
    %v252 = vadd.f32 %v145, %v251
    %253 = vmatprep.mubr.f32.mxu0 0.0
    %254 = vmatmul.mubr.f32.gmra.mrb[0].mxu0 %v163
    %v255 = vpop.f32.mrb[0].mxu0
    %v256 = vadd.f32 %v141, %v255
    %v257 = vpop.f32.mrb[0].mxu0
    %v258 = vadd.f32 %v145, %v257
    %259 = vmatprep.mubr.f32.mxu0 0.0
    %260 = vmatmul.mubr.f32.gmra.mrb[0].mxu0 %v166
    %v261 = vpop.f32.mrb[0].mxu0
    %v262 = vadd.f32 %v141, %v261
    %v263 = vpop.f32.mrb[0].mxu0
    %v264 = vadd.f32 %v145, %v263
    %265 = vmatprep.mubr.f32.mxu0 0.0
    %266 = vmatmul.mubr.f32.gmra.mrb[0].mxu0 %v169
    %v267 = vpop.f32.mrb[0].mxu0
    %v268 = vadd.f32 %v141, %v267
    %v269 = vpop.f32.mrb[0].mxu0
    %v270 = vadd.f32 %v145, %v269
    %271 = vmatprep.mubr.f32.mxu0 0.0
    %272 = vmatmul.mubr.f32.gmra.mrb[0].mxu0 %v172
    %v273 = vpop.f32.mrb[0].mxu0
    %v274 = vadd.f32 %v141, %v273
    %v275 = vpop.f32.mrb[0].mxu0
    %v276 = vadd.f32 %v145, %v275
    %277 = vmatprep.mubr.f32.mxu0 0.0
    %278 = vmatmul.mubr.f32.gmra.mrb[0].mxu0 %v175
    %v279 = vpop.f32.mrb[0].mxu0
    %v280 = vadd.f32 %v141, %v279
    %v281 = vpop.f32.mrb[0].mxu0
    %v282 = vadd.f32 %v145, %v281
    %283 = vmatprep.mubr.f32.mxu0 0.0
    %284 = vmatmul.mubr.f32.gmra.mrb[0].mxu0 %v178
    %v285 = vpop.f32.mrb[0].mxu0
    %v286 = vadd.f32 %v141, %v285
    %v287 = vpop.f32.mrb[0].mxu0
    %v288 = vadd.f32 %v145, %v287
    %289 = vmatprep.mubr.f32.mxu0 0.0
    %290 = vmatmul.mubr.f32.gmra.mrb[0].mxu0 %v181
    %v291 = vpop.f32.mrb[0].mxu0
    %v292 = vadd.f32 %v141, %v291
    %v293 = vpop.f32.mrb[0].mxu0
    %v294 = vadd.f32 %v145, %v293
    %295 = vdwg.mxu0
    %296 = vmatprep.subr.mxu0 %v131
    %297 = vmatpush1.msra.mxu0 %v130
    %298 = vmatprep.subr.mxu0 %v135
    %299 = vmatpush1.msra.mxu0 %v134
    %300 = vmatprep.subr.mxu0 0.0
    %301 = vmatpush1.msra.mxu0 0.0
    %302 = vmatprep.subr.mxu0 0.0
    %303 = vmatpush1.msra.mxu0 0.0
    %304 = vmatprep.subr.mxu0 0.0
    %305 = vmatpush1.msra.mxu0 0.0
    %306 = vmatprep.subr.mxu0 0.0
    %307 = vmatpush1.msra.mxu0 0.0
    %308 = vmatprep.subr.mxu0 0.0
    %309 = vmatpush1.msra.mxu0 0.0
    %310 = vmatprep.subr.mxu0 0.0
    %311 = vmatpush1.msra.mxu0 0.0
    %312 = vmatprep.subr.mxu0 0.0
    %313 = vmatpush1.msra.mxu0 0.0
    %314 = vmatprep.subr.mxu0 0.0
    %315 = vmatpush1.msra.mxu0 0.0
    %316 = vmatprep.subr.mxu0 0.0
    %317 = vmatpush1.msra.mxu0 0.0
    %318 = vmatprep.subr.mxu0 0.0
    %319 = vmatpush1.msra.mxu0 0.0
    %320 = vmatprep.subr.mxu0 0.0
    %321 = vmatpush1.msra.mxu0 0.0
    %322 = vmatprep.subr.mxu0 0.0
    %323 = vmatpush1.msra.mxu0 0.0
    %324 = vmatprep.subr.mxu0 0.0
    %325 = vmatpush1.msra.mxu0 0.0
    %326 = vmatprep.subr.mxu0 0.0
    %327 = vmatpush1.msra.mxu0 0.0
    %328 = vmatprep.subr.mxu0 0.0
    %329 = vmatpush1.msra.mxu0 0.0
    %330 = vmatprep.subr.mxu0 0.0
    %331 = vmatpush1.msra.mxu0 0.0
    %332 = vmatprep.subr.mxu0 0.0
    %333 = vmatpush1.msra.mxu0 0.0
    %334 = vmatprep.subr.mxu0 0.0
    %335 = vmatpush1.msra.mxu0 0.0
    %336 = vmatprep.subr.mxu0 0.0
    %337 = vmatpush1.msra.mxu0 0.0
    %338 = vmatprep.subr.mxu0 0.0
    %339 = vmatpush1.msra.mxu0 0.0
    %340 = vmatprep.subr.mxu0 0.0
    %341 = vmatpush1.msra.mxu0 0.0
    %342 = vmatprep.subr.mxu0 0.0
    %343 = vmatpush1.msra.mxu0 0.0
    %344 = vmatprep.subr.mxu0 0.0
    %345 = vmatpush1.msra.mxu0 0.0
    %346 = vmatprep.subr.mxu0 0.0
    %347 = vmatpush1.msra.mxu0 0.0
    %348 = vmatprep.subr.mxu0 0.0
    %349 = vmatpush1.msra.mxu0 0.0
    %350 = vmatprep.subr.mxu0 0.0
    %351 = vmatpush1.msra.mxu0 0.0
    %352 = vmatprep.subr.mxu0 0.0
    %353 = vmatpush1.msra.mxu0 0.0
    %354 = vmatprep.subr.mxu0 0.0
    %355 = vmatpush1.msra.mxu0 0.0
    %356 = vmatprep.subr.mxu0 0.0
    %357 = vmatpush1.msra.mxu0 0.0
    %358 = vmatprep.subr.mxu0 0.0
    %359 = vmatpush1.msra.mxu0 0.0
    %360 = vmatprep.mubr.f32.mxu0 0.0
    %361 = vmatmul.mubr.f32.gmra.mrb[0].mxu0 %v160
    %v362 = vpop.f32.mrb[0].mxu0
    %v363 = vadd.f32 %v149, %v362
    %v364 = vpop.f32.mrb[0].mxu0
    %v365 = vadd.f32 %v153, %v364
    %366 = vmatprep.mubr.f32.mxu0 0.0
    %367 = vmatmul.mubr.f32.gmra.mrb[0].mxu0 %v163
    %v368 = vpop.f32.mrb[0].mxu0
    %v369 = vadd.f32 %v149, %v368
    %v370 = vpop.f32.mrb[0].mxu0
    %v371 = vadd.f32 %v153, %v370
    %372 = vmatprep.mubr.f32.mxu0 0.0
    %373 = vmatmul.mubr.f32.gmra.mrb[0].mxu0 %v166
    %v374 = vpop.f32.mrb[0].mxu0
    %v375 = vadd.f32 %v149, %v374
    %v376 = vpop.f32.mrb[0].mxu0
    %v377 = vadd.f32 %v153, %v376
    %378 = vmatprep.mubr.f32.mxu0 0.0
    %379 = vmatmul.mubr.f32.gmra.mrb[0].mxu0 %v169
    %v380 = vpop.f32.mrb[0].mxu0
    %v381 = vadd.f32 %v149, %v380
    %v382 = vpop.f32.mrb[0].mxu0
    %v383 = vadd.f32 %v153, %v382
    %384 = vmatprep.mubr.f32.mxu0 0.0
    %385 = vmatmul.mubr.f32.gmra.mrb[0].mxu0 %v172
    %v386 = vpop.f32.mrb[0].mxu0
    %v387 = vadd.f32 %v149, %v386
    %v388 = vpop.f32.mrb[0].mxu0
    %v389 = vadd.f32 %v153, %v388
    %390 = vmatprep.mubr.f32.mxu0 0.0
    %391 = vmatmul.mubr.f32.gmra.mrb[0].mxu0 %v175
    %v392 = vpop.f32.mrb[0].mxu0
    %v393 = vadd.f32 %v149, %v392
    %v394 = vpop.f32.mrb[0].mxu0
    %v395 = vadd.f32 %v153, %v394
    %396 = vmatprep.mubr.f32.mxu0 0.0
    %397 = vmatmul.mubr.f32.gmra.mrb[0].mxu0 %v178
    %v398 = vpop.f32.mrb[0].mxu0
    %v399 = vadd.f32 %v149, %v398
    %v400 = vpop.f32.mrb[0].mxu0
    %v401 = vadd.f32 %v153, %v400
    %402 = vmatprep.mubr.f32.mxu0 0.0
    %403 = vmatmul.mubr.f32.gmra.mrb[0].mxu0 %v181
    %v404 = vpop.f32.mrb[0].mxu0
    %v405 = vadd.f32 %v149, %v404
    %v406 = vpop.f32.mrb[0].mxu0
    %v407 = vadd.f32 %v153, %v406
    %408 = vdwg.mxu0
    %v409 = vlaneseq
    %v410 = vand.u32 %v409, 127
    %vm411 = vcmp.lt.s32.totalorder %v410, 64
    %vm412 = vmxor %vm411, 1
    %v413 = vadd.s32 %v410, 128
    %v414 = vadd.s32 %v410, 256
    %v415 = vadd.s32 %v410, 384
    %vm416 = vcmp.lt.s32.totalorder %v410, 0
    %v417 = vsub.s32 0, %v410
    %v418 = vsel %vm416, %v417, %v410
    %v419 = vshrl.u32 %v418, 7
    %v420 = vand.u32 %v418, 127
    %v421 = vsub.s32 0, %v420
    %v422 = vsel %vm416, %v421, %v420
    %vm423 = vcmp.lt.s32.totalorder %v413, 0
    %v424 = vsub.s32 0, %v413
    %v425 = vsel %vm423, %v424, %v413
    %v426 = vshrl.u32 %v425, 7
    %v427 = vand.u32 %v425, 127
    %v428 = vsub.s32 0, %v427
    %v429 = vsel %vm423, %v428, %v427
    %vm430 = vcmp.lt.s32.totalorder %v414, 0
    %v431 = vsub.s32 0, %v414
    %v432 = vsel %vm430, %v431, %v414
    %v433 = vshrl.u32 %v432, 7
    %v434 = vand.u32 %v432, 127
    %v435 = vsub.s32 0, %v434
    %v436 = vsel %vm430, %v435, %v434
    %vm437 = vcmp.lt.s32.totalorder %v415, 0
    %v438 = vsub.s32 0, %v415
    %v439 = vsel %vm437, %v438, %v415
    %v440 = vshrl.u32 %v439, 7
    %v441 = vand.u32 %v439, 127
    %v442 = vsub.s32 0, %v441
    %v443 = vsel %vm437, %v442, %v441
    %vm444 = vcmp.ne.s32.totalorder %v422, 0
    %vm445 = vcmp.ne.s32.totalorder %v429, 0
    %vm446 = vcmp.ne.s32.totalorder %v436, 0
    %vm447 = vcmp.ne.s32.totalorder %v443, 0
    %vm448 = vcmp.lt.s32.totalorder %v422, 0
    %vm449 = vcmp.lt.s32.totalorder %v429, 0
    %vm450 = vcmp.lt.s32.totalorder %v436, 0
    %vm451 = vcmp.lt.s32.totalorder %v443, 0
    %vm452 = vmand %vm448, %vm444
    %vm453 = vmand %vm449, %vm445
    %vm454 = vmand %vm450, %vm446
    %vm455 = vmand %vm451, %vm447
    %v456 = vadd.s32 %v422, 128
    %v457 = vadd.s32 %v429, 128
    %v458 = vadd.s32 %v436, 128
    %v459 = vadd.s32 %v443, 128
    %v460 = vsel %vm452, %v456, %v422
    %v461 = vsel %vm453, %v457, %v429
    %v462 = vsel %vm454, %v458, %v436
    %v463 = vsel %vm455, %v459, %v443
    %vm464 = vcmp.lt.s32.totalorder %v460, 64
    %vm465 = vcmp.lt.s32.totalorder %v461, 64
    %vm466 = vcmp.lt.s32.totalorder %v462, 64
    %vm467 = vcmp.lt.s32.totalorder %v463, 64
    %v468 = vsel %vm464, %v250, %v292
    %v469 = vsel %vm465, %v252, %v294
    %v470 = vsel %vm466, %v363, %v405
    %v471 = vsel %vm467, %v365, %v407
    %v472 = vsel %vm464, %v256, %v286
    %v473 = vsel %vm465, %v258, %v288
    %v474 = vsel %vm466, %v369, %v399
    %v475 = vsel %vm467, %v371, %v401
    %v476 = vsel %vm464, %v262, %v280
    %v477 = vsel %vm465, %v264, %v282
    %v478 = vsel %vm466, %v375, %v393
    %v479 = vsel %vm467, %v377, %v395
    %v480 = vsel %vm464, %v268, %v274
    %v481 = vsel %vm465, %v270, %v276
    %v482 = vsel %vm466, %v381, %v387
    %v483 = vsel %vm467, %v383, %v389
    %v484 = vsel %vm464, %v274, %v268
    %v485 = vsel %vm465, %v276, %v270
    %v486 = vsel %vm466, %v387, %v381
    %v487 = vsel %vm467, %v389, %v383
    %v488 = vsel %vm464, %v280, %v262
    %v489 = vsel %vm465, %v282, %v264
    %v490 = vsel %vm466, %v393, %v375
    %v491 = vsel %vm467, %v395, %v377
    %v492 = vsel %vm464, %v286, %v256
    %v493 = vsel %vm465, %v288, %v258
    %v494 = vsel %vm466, %v399, %v369
    %v495 = vsel %vm467, %v401, %v371
    %v496 = vsel %vm464, %v292, %v250
    %v497 = vsel %vm465, %v294, %v252
    %v498 = vsel %vm466, %v405, %v363
    %v499 = vsel %vm467, %v407, %v365
    %500 = vmatprep.subr.mxu0 %v57
    %501 = vmatpush1.msra.mxu0 %v56
    %502 = vmatprep.subr.mxu0 %v61
    %503 = vmatpush1.msra.mxu0 %v60
    %504 = vmatprep.subr.mxu0 %v65
    %505 = vmatpush1.msra.mxu0 %v64
    %506 = vmatprep.subr.mxu0 %v69
    %507 = vmatpush1.msra.mxu0 %v68
    %508 = vmatprep.subr.mxu0 %v73
    %509 = vmatpush1.msra.mxu0 %v72
    %510 = vmatprep.subr.mxu0 %v77
    %511 = vmatpush1.msra.mxu0 %v76
    %512 = vmatprep.subr.mxu0 %v81
    %513 = vmatpush1.msra.mxu0 %v80
    %514 = vmatprep.subr.mxu0 %v85
    %515 = vmatpush1.msra.mxu0 %v84
    %516 = vmatprep.subr.mxu0 %v89
    %517 = vmatpush1.msra.mxu0 %v88
    %518 = vmatprep.subr.mxu0 %v93
    %519 = vmatpush1.msra.mxu0 %v92
    %520 = vmatprep.subr.mxu0 %v97
    %521 = vmatpush1.msra.mxu0 %v96
    %522 = vmatprep.subr.mxu0 %v101
    %523 = vmatpush1.msra.mxu0 %v100
    %524 = vmatprep.subr.mxu0 %v105
    %525 = vmatpush1.msra.mxu0 %v104
    %526 = vmatprep.subr.mxu0 %v109
    %527 = vmatpush1.msra.mxu0 %v108
    %528 = vmatprep.subr.mxu0 %v113
    %529 = vmatpush1.msra.mxu0 %v112
    %530 = vmatprep.subr.mxu0 %v117
    %531 = vmatpush1.msra.mxu0 %v116
    %532 = vmatprep.subr.mxu0 0.0
    %533 = vmatpush1.msra.mxu0 0.0
    %534 = vmatprep.subr.mxu0 0.0
    %535 = vmatpush1.msra.mxu0 0.0
    %536 = vmatprep.subr.mxu0 0.0
    %537 = vmatpush1.msra.mxu0 0.0
    %538 = vmatprep.subr.mxu0 0.0
    %539 = vmatpush1.msra.mxu0 0.0
    %540 = vmatprep.subr.mxu0 0.0
    %541 = vmatpush1.msra.mxu0 0.0
    %542 = vmatprep.subr.mxu0 0.0
    %543 = vmatpush1.msra.mxu0 0.0
    %544 = vmatprep.subr.mxu0 0.0
    %545 = vmatpush1.msra.mxu0 0.0
    %546 = vmatprep.subr.mxu0 0.0
    %547 = vmatpush1.msra.mxu0 0.0
    %548 = vmatprep.subr.mxu0 0.0
    %549 = vmatpush1.msra.mxu0 0.0
    %550 = vmatprep.subr.mxu0 0.0
    %551 = vmatpush1.msra.mxu0 0.0
    %552 = vmatprep.subr.mxu0 0.0
    %553 = vmatpush1.msra.mxu0 0.0
    %554 = vmatprep.subr.mxu0 0.0
    %555 = vmatpush1.msra.mxu0 0.0
    %556 = vmatprep.subr.mxu0 0.0
    %557 = vmatpush1.msra.mxu0 0.0
    %558 = vmatprep.subr.mxu0 0.0
    %559 = vmatpush1.msra.mxu0 0.0
    %560 = vmatprep.subr.mxu0 0.0
    %561 = vmatpush1.msra.mxu0 0.0
    %562 = vmatprep.subr.mxu0 0.0
    %563 = vmatpush1.msra.mxu0 0.0
    %564 = vmatprep.mubr.f32.mxu0 0.0
    %565 = vmatmul.mubr.f32.gmra.mrb[0].mxu0 0.0
    %v566 = vpop.f32.mrb[0].mxu0
    %v567 = vadd.f32 0.0, %v566
    %v568 = vpop.f32.mrb[0].mxu0
    %v569 = vadd.f32 0.0, %v568
    %570 = vdwg.mxu0
    %571 = vmatprep.subr.mxu0 %v59
    %572 = vmatpush1.msra.mxu0 %v58
    %573 = vmatprep.subr.mxu0 %v63
    %574 = vmatpush1.msra.mxu0 %v62
    %575 = vmatprep.subr.mxu0 %v67
    %576 = vmatpush1.msra.mxu0 %v66
    %577 = vmatprep.subr.mxu0 %v71
    %578 = vmatpush1.msra.mxu0 %v70
    %579 = vmatprep.subr.mxu0 %v75
    %580 = vmatpush1.msra.mxu0 %v74
    %581 = vmatprep.subr.mxu0 %v79
    %582 = vmatpush1.msra.mxu0 %v78
    %583 = vmatprep.subr.mxu0 %v83
    %584 = vmatpush1.msra.mxu0 %v82
    %585 = vmatprep.subr.mxu0 %v87
    %586 = vmatpush1.msra.mxu0 %v86
    %587 = vmatprep.subr.mxu0 %v91
    %588 = vmatpush1.msra.mxu0 %v90
    %589 = vmatprep.subr.mxu0 %v95
    %590 = vmatpush1.msra.mxu0 %v94
    %591 = vmatprep.subr.mxu0 %v99
    %592 = vmatpush1.msra.mxu0 %v98
    %593 = vmatprep.subr.mxu0 %v103
    %594 = vmatpush1.msra.mxu0 %v102
    %595 = vmatprep.subr.mxu0 %v107
    %596 = vmatpush1.msra.mxu0 %v106
    %597 = vmatprep.subr.mxu0 %v111
    %598 = vmatpush1.msra.mxu0 %v110
    %599 = vmatprep.subr.mxu0 %v115
    %600 = vmatpush1.msra.mxu0 %v114
    %601 = vmatprep.subr.mxu0 %v119
    %602 = vmatpush1.msra.mxu0 %v118
    %603 = vmatprep.subr.mxu0 0.0
    %604 = vmatpush1.msra.mxu0 0.0
    %605 = vmatprep.subr.mxu0 0.0
    %606 = vmatpush1.msra.mxu0 0.0
    %607 = vmatprep.subr.mxu0 0.0
    %608 = vmatpush1.msra.mxu0 0.0
    %609 = vmatprep.subr.mxu0 0.0
    %610 = vmatpush1.msra.mxu0 0.0
    %611 = vmatprep.subr.mxu0 0.0
    %612 = vmatpush1.msra.mxu0 0.0
    %613 = vmatprep.subr.mxu0 0.0
    %614 = vmatpush1.msra.mxu0 0.0
    %615 = vmatprep.subr.mxu0 0.0
    %616 = vmatpush1.msra.mxu0 0.0
    %617 = vmatprep.subr.mxu0 0.0
    %618 = vmatpush1.msra.mxu0 0.0
    %619 = vmatprep.subr.mxu0 0.0
    %620 = vmatpush1.msra.mxu0 0.0
    %621 = vmatprep.subr.mxu0 0.0
    %622 = vmatpush1.msra.mxu0 0.0
    %623 = vmatprep.subr.mxu0 0.0
    %624 = vmatpush1.msra.mxu0 0.0
    %625 = vmatprep.subr.mxu0 0.0
    %626 = vmatpush1.msra.mxu0 0.0
    %627 = vmatprep.subr.mxu0 0.0
    %628 = vmatpush1.msra.mxu0 0.0
    %629 = vmatprep.subr.mxu0 0.0
    %630 = vmatpush1.msra.mxu0 0.0
    %631 = vmatprep.subr.mxu0 0.0
    %632 = vmatpush1.msra.mxu0 0.0
    %633 = vmatprep.subr.mxu0 0.0
    %634 = vmatpush1.msra.mxu0 0.0
    %635 = vmatprep.mubr.f32.mxu0 0.0
    %636 = vmatmul.mubr.f32.gmra.mrb[0].mxu0 0.0
    %v637 = vpop.f32.mrb[0].mxu0
    %v638 = vadd.f32 0.0, %v637
    %v639 = vpop.f32.mrb[0].mxu0
    %v640 = vadd.f32 0.0, %v639
    %641 = vdwg.mxu0
    %v642 = vadd.f32 %v468, %v567
    %v643 = vadd.f32 %v469, %v569
    %v644 = vadd.f32 %v470, %v638
    %v645 = vadd.f32 %v471, %v640
    %v646 = vmul.f32 %v642, 0.5
    %v647 = vmul.f32 %v643, 0.5
    %v648 = vmul.f32 %v644, 0.5
    %v649 = vtanh.pop %v646
    %v650 = vtanh.pop %v647
    %v651 = vtanh.pop %v648
    %v652 = vmul.f32 %v649, 0.5
    %v653 = vmul.f32 %v650, 0.5
    %v654 = vmul.f32 %v651, 0.5
    %v655 = vadd.f32 %v652, 0.5
    %v656 = vadd.f32 %v653, 0.5
    %v657 = vadd.f32 %v654, 0.5
    %v658 = vtanh.pop %v645
    %v659 = vmul.f32 %v656, 0.0
    %v660 = vmul.f32 %v655, %v658
    %v661 = vadd.f32 %v659, %v660
    %v662 = vtanh.pop %v661
    %v663 = vmul.f32 %v657, %v662
    %vm664 = vcmp.gt.s32.totalorder %v55, 0
    %v665 = vsel %vm664, 1, 0
    %666 = vset.pattern.permute.xlu0 0
    %667 = vperm.xlu0 %666, %v665
    %v668 = vpop.permute.xlu0 %667
    %vm669 = vcmp.eq.s32.totalorder %v668, 1
    %vm670 = vmand %vm411, %vm669
    %vm671 = vcmp.gt.s32.totalorder %v55, 7
    %v672 = vsel %vm671, 1, 0
    %673 = vset.pattern.permute.xlu0 0
    %674 = vperm.xlu0 %673, %v672
    %v675 = vpop.permute.xlu0 %674
    %vm676 = vcmp.eq.s32.totalorder %v675, 1
    %vm677 = vmand %vm412, %vm676
    %vm678 = vmor %vm670, %vm677
    %v679 = vsel %vm678, %v663, 0.0
    %v680 = vsel %vm678, %v661, 0.0
    %681 = vmatprep.subr.mxu0 %v57
    %682 = vmatpush1.msra.mxu0 %v56
    %683 = vmatprep.subr.mxu0 %v61
    %684 = vmatpush1.msra.mxu0 %v60
    %685 = vmatprep.subr.mxu0 %v65
    %686 = vmatpush1.msra.mxu0 %v64
    %687 = vmatprep.subr.mxu0 %v69
    %688 = vmatpush1.msra.mxu0 %v68
    %689 = vmatprep.subr.mxu0 %v73
    %690 = vmatpush1.msra.mxu0 %v72
    %691 = vmatprep.subr.mxu0 %v77
    %692 = vmatpush1.msra.mxu0 %v76
    %693 = vmatprep.subr.mxu0 %v81
    %694 = vmatpush1.msra.mxu0 %v80
    %695 = vmatprep.subr.mxu0 %v85
    %696 = vmatpush1.msra.mxu0 %v84
    %697 = vmatprep.subr.mxu0 %v89
    %698 = vmatpush1.msra.mxu0 %v88
    %699 = vmatprep.subr.mxu0 %v93
    %700 = vmatpush1.msra.mxu0 %v92
    %701 = vmatprep.subr.mxu0 %v97
    %702 = vmatpush1.msra.mxu0 %v96
    %703 = vmatprep.subr.mxu0 %v101
    %704 = vmatpush1.msra.mxu0 %v100
    %705 = vmatprep.subr.mxu0 %v105
    %706 = vmatpush1.msra.mxu0 %v104
    %707 = vmatprep.subr.mxu0 %v109
    %708 = vmatpush1.msra.mxu0 %v108
    %709 = vmatprep.subr.mxu0 %v113
    %710 = vmatpush1.msra.mxu0 %v112
    %711 = vmatprep.subr.mxu0 %v117
    %712 = vmatpush1.msra.mxu0 %v116
    %713 = vmatprep.subr.mxu0 0.0
    %714 = vmatpush1.msra.mxu0 0.0
    %715 = vmatprep.subr.mxu0 0.0
    %716 = vmatpush1.msra.mxu0 0.0
    %717 = vmatprep.subr.mxu0 0.0
    %718 = vmatpush1.msra.mxu0 0.0
    %719 = vmatprep.subr.mxu0 0.0
    %720 = vmatpush1.msra.mxu0 0.0
    %721 = vmatprep.subr.mxu0 0.0
    %722 = vmatpush1.msra.mxu0 0.0
    %723 = vmatprep.subr.mxu0 0.0
    %724 = vmatpush1.msra.mxu0 0.0
    %725 = vmatprep.subr.mxu0 0.0
    %726 = vmatpush1.msra.mxu0 0.0
    %727 = vmatprep.subr.mxu0 0.0
    %728 = vmatpush1.msra.mxu0 0.0
    %729 = vmatprep.subr.mxu0 0.0
    %730 = vmatpush1.msra.mxu0 0.0
    %731 = vmatprep.subr.mxu0 0.0
    %732 = vmatpush1.msra.mxu0 0.0
    %733 = vmatprep.subr.mxu0 0.0
    %734 = vmatpush1.msra.mxu0 0.0
    %735 = vmatprep.subr.mxu0 0.0
    %736 = vmatpush1.msra.mxu0 0.0
    %737 = vmatprep.subr.mxu0 0.0
    %738 = vmatpush1.msra.mxu0 0.0
    %739 = vmatprep.subr.mxu0 0.0
    %740 = vmatpush1.msra.mxu0 0.0
    %741 = vmatprep.subr.mxu0 0.0
    %742 = vmatpush1.msra.mxu0 0.0
    %743 = vmatprep.subr.mxu0 0.0
    %744 = vmatpush1.msra.mxu0 0.0
    %745 = vmatprep.mubr.f32.mxu0 0.0
    %746 = vmatmul.mubr.f32.gmra.mrb[0].mxu0 %v679
    %v747 = vpop.f32.mrb[0].mxu0
    %v748 = vadd.f32 0.0, %v747
    %v749 = vpop.f32.mrb[0].mxu0
    %v750 = vadd.f32 0.0, %v749
    %751 = vdwg.mxu0
    %752 = vmatprep.subr.mxu0 %v59
    %753 = vmatpush1.msra.mxu0 %v58
    %754 = vmatprep.subr.mxu0 %v63
    %755 = vmatpush1.msra.mxu0 %v62
    %756 = vmatprep.subr.mxu0 %v67
    %757 = vmatpush1.msra.mxu0 %v66
    %758 = vmatprep.subr.mxu0 %v71
    %759 = vmatpush1.msra.mxu0 %v70
    %760 = vmatprep.subr.mxu0 %v75
    %761 = vmatpush1.msra.mxu0 %v74
    %762 = vmatprep.subr.mxu0 %v79
    %763 = vmatpush1.msra.mxu0 %v78
    %764 = vmatprep.subr.mxu0 %v83
    %765 = vmatpush1.msra.mxu0 %v82
    %766 = vmatprep.subr.mxu0 %v87
    %767 = vmatpush1.msra.mxu0 %v86
    %768 = vmatprep.subr.mxu0 %v91
    %769 = vmatpush1.msra.mxu0 %v90
    %770 = vmatprep.subr.mxu0 %v95
    %771 = vmatpush1.msra.mxu0 %v94
    %772 = vmatprep.subr.mxu0 %v99
    %773 = vmatpush1.msra.mxu0 %v98
    %774 = vmatprep.subr.mxu0 %v103
    %775 = vmatpush1.msra.mxu0 %v102
    %776 = vmatprep.subr.mxu0 %v107
    %777 = vmatpush1.msra.mxu0 %v106
    %778 = vmatprep.subr.mxu0 %v111
    %779 = vmatpush1.msra.mxu0 %v110
    %780 = vmatprep.subr.mxu0 %v115
    %781 = vmatpush1.msra.mxu0 %v114
    %782 = vmatprep.subr.mxu0 %v119
    %783 = vmatpush1.msra.mxu0 %v118
    %784 = vmatprep.subr.mxu0 0.0
    %785 = vmatpush1.msra.mxu0 0.0
    %786 = vmatprep.subr.mxu0 0.0
    %787 = vmatpush1.msra.mxu0 0.0
    %788 = vmatprep.subr.mxu0 0.0
    %789 = vmatpush1.msra.mxu0 0.0
    %790 = vmatprep.subr.mxu0 0.0
    %791 = vmatpush1.msra.mxu0 0.0
    %792 = vmatprep.subr.mxu0 0.0
    %793 = vmatpush1.msra.mxu0 0.0
    %794 = vmatprep.subr.mxu0 0.0
    %795 = vmatpush1.msra.mxu0 0.0
    %796 = vmatprep.subr.mxu0 0.0
    %797 = vmatpush1.msra.mxu0 0.0
    %798 = vmatprep.subr.mxu0 0.0
    %799 = vmatpush1.msra.mxu0 0.0
    %800 = vmatprep.subr.mxu0 0.0
    %801 = vmatpush1.msra.mxu0 0.0
    %802 = vmatprep.subr.mxu0 0.0
    %803 = vmatpush1.msra.mxu0 0.0
    %804 = vmatprep.subr.mxu0 0.0
    %805 = vmatpush1.msra.mxu0 0.0
    %806 = vmatprep.subr.mxu0 0.0
    %807 = vmatpush1.msra.mxu0 0.0
    %808 = vmatprep.subr.mxu0 0.0
    %809 = vmatpush1.msra.mxu0 0.0
    %810 = vmatprep.subr.mxu0 0.0
    %811 = vmatpush1.msra.mxu0 0.0
    %812 = vmatprep.subr.mxu0 0.0
    %813 = vmatpush1.msra.mxu0 0.0
    %814 = vmatprep.subr.mxu0 0.0
    %815 = vmatpush1.msra.mxu0 0.0
    %816 = vmatprep.mubr.f32.mxu0 0.0
    %817 = vmatmul.mubr.f32.gmra.mrb[0].mxu0 %v679
    %v818 = vpop.f32.mrb[0].mxu0
    %v819 = vadd.f32 0.0, %v818
    %v820 = vpop.f32.mrb[0].mxu0
    %v821 = vadd.f32 0.0, %v820
    %822 = vdwg.mxu0
    %v823 = vadd.f32 %v472, %v748
    %v824 = vadd.f32 %v473, %v750
    %v825 = vadd.f32 %v474, %v819
    %v826 = vadd.f32 %v475, %v821
    %v827 = vmul.f32 %v823, 0.5
    %v828 = vmul.f32 %v824, 0.5
    %v829 = vmul.f32 %v825, 0.5
    %v830 = vtanh.pop %v827
    %v831 = vtanh.pop %v828
    %v832 = vtanh.pop %v829
    %v833 = vmul.f32 %v830, 0.5
    %v834 = vmul.f32 %v831, 0.5
    %v835 = vmul.f32 %v832, 0.5
    %v836 = vadd.f32 %v833, 0.5
    %v837 = vadd.f32 %v834, 0.5
    %v838 = vadd.f32 %v835, 0.5
    %v839 = vtanh.pop %v826
    %v840 = vmul.f32 %v837, %v680
    %v841 = vmul.f32 %v836, %v839
    %v842 = vadd.f32 %v840, %v841
    %v843 = vtanh.pop %v842
    %v844 = vmul.f32 %v838, %v843
    %vm845 = vcmp.gt.s32.totalorder %v55, 1
    %v846 = vsel %vm845, 1, 0
    %847 = vset.pattern.permute.xlu0 0
    %848 = vperm.xlu0 %847, %v846
    %v849 = vpop.permute.xlu0 %848
    %vm850 = vcmp.eq.s32.totalorder %v849, 1
    %vm851 = vmand %vm411, %vm850
    %vm852 = vcmp.gt.s32.totalorder %v55, 6
    %v853 = vsel %vm852, 1, 0
    %854 = vset.pattern.permute.xlu0 0
    %855 = vperm.xlu0 %854, %v853
    %v856 = vpop.permute.xlu0 %855
    %vm857 = vcmp.eq.s32.totalorder %v856, 1
    %vm858 = vmand %vm412, %vm857
    %vm859 = vmor %vm851, %vm858
    %v860 = vsel %vm859, %v844, %v679
    %v861 = vsel %vm859, %v842, %v680
    %862 = vmatprep.subr.mxu0 %v57
    %863 = vmatpush1.msra.mxu0 %v56
    %864 = vmatprep.subr.mxu0 %v61
    %865 = vmatpush1.msra.mxu0 %v60
    %866 = vmatprep.subr.mxu0 %v65
    %867 = vmatpush1.msra.mxu0 %v64
    %868 = vmatprep.subr.mxu0 %v69
    %869 = vmatpush1.msra.mxu0 %v68
    %870 = vmatprep.subr.mxu0 %v73
    %871 = vmatpush1.msra.mxu0 %v72
    %872 = vmatprep.subr.mxu0 %v77
    %873 = vmatpush1.msra.mxu0 %v76
    %874 = vmatprep.subr.mxu0 %v81
    %875 = vmatpush1.msra.mxu0 %v80
    %876 = vmatprep.subr.mxu0 %v85
    %877 = vmatpush1.msra.mxu0 %v84
    %878 = vmatprep.subr.mxu0 %v89
    %879 = vmatpush1.msra.mxu0 %v88
    %880 = vmatprep.subr.mxu0 %v93
    %881 = vmatpush1.msra.mxu0 %v92
    %882 = vmatprep.subr.mxu0 %v97
    %883 = vmatpush1.msra.mxu0 %v96
    %884 = vmatprep.subr.mxu0 %v101
    %885 = vmatpush1.msra.mxu0 %v100
    %886 = vmatprep.subr.mxu0 %v105
    %887 = vmatpush1.msra.mxu0 %v104
    %888 = vmatprep.subr.mxu0 %v109
    %889 = vmatpush1.msra.mxu0 %v108
    %890 = vmatprep.subr.mxu0 %v113
    %891 = vmatpush1.msra.mxu0 %v112
    %892 = vmatprep.subr.mxu0 %v117
    %893 = vmatpush1.msra.mxu0 %v116
    %894 = vmatprep.subr.mxu0 0.0
    %895 = vmatpush1.msra.mxu0 0.0
    %896 = vmatprep.subr.mxu0 0.0
    %897 = vmatpush1.msra.mxu0 0.0
    %898 = vmatprep.subr.mxu0 0.0
    %899 = vmatpush1.msra.mxu0 0.0
    %900 = vmatprep.subr.mxu0 0.0
    %901 = vmatpush1.msra.mxu0 0.0
    %902 = vmatprep.subr.mxu0 0.0
    %903 = vmatpush1.msra.mxu0 0.0
    %904 = vmatprep.subr.mxu0 0.0
    %905 = vmatpush1.msra.mxu0 0.0
    %906 = vmatprep.subr.mxu0 0.0
    %907 = vmatpush1.msra.mxu0 0.0
    %908 = vmatprep.subr.mxu0 0.0
    %909 = vmatpush1.msra.mxu0 0.0
    %910 = vmatprep.subr.mxu0 0.0
    %911 = vmatpush1.msra.mxu0 0.0
    %912 = vmatprep.subr.mxu0 0.0
    %913 = vmatpush1.msra.mxu0 0.0
    %914 = vmatprep.subr.mxu0 0.0
    %915 = vmatpush1.msra.mxu0 0.0
    %916 = vmatprep.subr.mxu0 0.0
    %917 = vmatpush1.msra.mxu0 0.0
    %918 = vmatprep.subr.mxu0 0.0
    %919 = vmatpush1.msra.mxu0 0.0
    %920 = vmatprep.subr.mxu0 0.0
    %921 = vmatpush1.msra.mxu0 0.0
    %922 = vmatprep.subr.mxu0 0.0
    %923 = vmatpush1.msra.mxu0 0.0
    %924 = vmatprep.subr.mxu0 0.0
    %925 = vmatpush1.msra.mxu0 0.0
    %926 = vmatprep.mubr.f32.mxu0 0.0
    %927 = vmatmul.mubr.f32.gmra.mrb[0].mxu0 %v860
    %v928 = vpop.f32.mrb[0].mxu0
    %v929 = vadd.f32 0.0, %v928
    %v930 = vpop.f32.mrb[0].mxu0
    %v931 = vadd.f32 0.0, %v930
    %932 = vdwg.mxu0
    %933 = vmatprep.subr.mxu0 %v59
    %934 = vmatpush1.msra.mxu0 %v58
    %935 = vmatprep.subr.mxu0 %v63
    %936 = vmatpush1.msra.mxu0 %v62
    %937 = vmatprep.subr.mxu0 %v67
    %938 = vmatpush1.msra.mxu0 %v66
    %939 = vmatprep.subr.mxu0 %v71
    %940 = vmatpush1.msra.mxu0 %v70
    %941 = vmatprep.subr.mxu0 %v75
    %942 = vmatpush1.msra.mxu0 %v74
    %943 = vmatprep.subr.mxu0 %v79
    %944 = vmatpush1.msra.mxu0 %v78
    %945 = vmatprep.subr.mxu0 %v83
    %946 = vmatpush1.msra.mxu0 %v82
    %947 = vmatprep.subr.mxu0 %v87
    %948 = vmatpush1.msra.mxu0 %v86
    %949 = vmatprep.subr.mxu0 %v91
    %950 = vmatpush1.msra.mxu0 %v90
    %951 = vmatprep.subr.mxu0 %v95
    %952 = vmatpush1.msra.mxu0 %v94
    %953 = vmatprep.subr.mxu0 %v99
    %954 = vmatpush1.msra.mxu0 %v98
    %955 = vmatprep.subr.mxu0 %v103
    %956 = vmatpush1.msra.mxu0 %v102
    %957 = vmatprep.subr.mxu0 %v107
    %958 = vmatpush1.msra.mxu0 %v106
    %959 = vmatprep.subr.mxu0 %v111
    %960 = vmatpush1.msra.mxu0 %v110
    %961 = vmatprep.subr.mxu0 %v115
    %962 = vmatpush1.msra.mxu0 %v114
    %963 = vmatprep.subr.mxu0 %v119
    %964 = vmatpush1.msra.mxu0 %v118
    %965 = vmatprep.subr.mxu0 0.0
    %966 = vmatpush1.msra.mxu0 0.0
    %967 = vmatprep.subr.mxu0 0.0
    %968 = vmatpush1.msra.mxu0 0.0
    %969 = vmatprep.subr.mxu0 0.0
    %970 = vmatpush1.msra.mxu0 0.0
    %971 = vmatprep.subr.mxu0 0.0
    %972 = vmatpush1.msra.mxu0 0.0
    %973 = vmatprep.subr.mxu0 0.0
    %974 = vmatpush1.msra.mxu0 0.0
    %975 = vmatprep.subr.mxu0 0.0
    %976 = vmatpush1.msra.mxu0 0.0
    %977 = vmatprep.subr.mxu0 0.0
    %978 = vmatpush1.msra.mxu0 0.0
    %979 = vmatprep.subr.mxu0 0.0
    %980 = vmatpush1.msra.mxu0 0.0
    %981 = vmatprep.subr.mxu0 0.0
    %982 = vmatpush1.msra.mxu0 0.0
    %983 = vmatprep.subr.mxu0 0.0
    %984 = vmatpush1.msra.mxu0 0.0
    %985 = vmatprep.subr.mxu0 0.0
    %986 = vmatpush1.msra.mxu0 0.0
    %987 = vmatprep.subr.mxu0 0.0
    %988 = vmatpush1.msra.mxu0 0.0
    %989 = vmatprep.subr.mxu0 0.0
    %990 = vmatpush1.msra.mxu0 0.0
    %991 = vmatprep.subr.mxu0 0.0
    %992 = vmatpush1.msra.mxu0 0.0
    %993 = vmatprep.subr.mxu0 0.0
    %994 = vmatpush1.msra.mxu0 0.0
    %995 = vmatprep.subr.mxu0 0.0
    %996 = vmatpush1.msra.mxu0 0.0
    %997 = vmatprep.mubr.f32.mxu0 0.0
    %998 = vmatmul.mubr.f32.gmra.mrb[0].mxu0 %v860
    %v999 = vpop.f32.mrb[0].mxu0
    %v1000 = vadd.f32 0.0, %v999
    %v1001 = vpop.f32.mrb[0].mxu0
    %v1002 = vadd.f32 0.0, %v1001
    %1003 = vdwg.mxu0
    %v1004 = vadd.f32 %v476, %v929
    %v1005 = vadd.f32 %v477, %v931
    %v1006 = vadd.f32 %v478, %v1000
    %v1007 = vadd.f32 %v479, %v1002
    %v1008 = vmul.f32 %v1004, 0.5
    %v1009 = vmul.f32 %v1005, 0.5
    %v1010 = vmul.f32 %v1006, 0.5
    %v1011 = vtanh.pop %v1008
    %v1012 = vtanh.pop %v1009
    %v1013 = vtanh.pop %v1010
    %v1014 = vmul.f32 %v1011, 0.5
    %v1015 = vmul.f32 %v1012, 0.5
    %v1016 = vmul.f32 %v1013, 0.5
    %v1017 = vadd.f32 %v1014, 0.5
    %v1018 = vadd.f32 %v1015, 0.5
    %v1019 = vadd.f32 %v1016, 0.5
    %v1020 = vtanh.pop %v1007
    %v1021 = vmul.f32 %v1018, %v861
    %v1022 = vmul.f32 %v1017, %v1020
    %v1023 = vadd.f32 %v1021, %v1022
    %v1024 = vtanh.pop %v1023
    %v1025 = vmul.f32 %v1019, %v1024
    %vm1026 = vcmp.gt.s32.totalorder %v55, 2
    %v1027 = vsel %vm1026, 1, 0
    %1028 = vset.pattern.permute.xlu0 0
    %1029 = vperm.xlu0 %1028, %v1027
    %v1030 = vpop.permute.xlu0 %1029
    %vm1031 = vcmp.eq.s32.totalorder %v1030, 1
    %vm1032 = vmand %vm411, %vm1031
    %vm1033 = vcmp.gt.s32.totalorder %v55, 5
    %v1034 = vsel %vm1033, 1, 0
    %1035 = vset.pattern.permute.xlu0 0
    %1036 = vperm.xlu0 %1035, %v1034
    %v1037 = vpop.permute.xlu0 %1036
    %vm1038 = vcmp.eq.s32.totalorder %v1037, 1
    %vm1039 = vmand %vm412, %vm1038
    %vm1040 = vmor %vm1032, %vm1039
    %v1041 = vsel %vm1040, %v1025, %v860
    %v1042 = vsel %vm1040, %v1023, %v861
    %1043 = vmatprep.subr.mxu0 %v57
    %1044 = vmatpush1.msra.mxu0 %v56
    %1045 = vmatprep.subr.mxu0 %v61
    %1046 = vmatpush1.msra.mxu0 %v60
    %1047 = vmatprep.subr.mxu0 %v65
    %1048 = vmatpush1.msra.mxu0 %v64
    %1049 = vmatprep.subr.mxu0 %v69
    %1050 = vmatpush1.msra.mxu0 %v68
    %1051 = vmatprep.subr.mxu0 %v73
    %1052 = vmatpush1.msra.mxu0 %v72
    %1053 = vmatprep.subr.mxu0 %v77
    %1054 = vmatpush1.msra.mxu0 %v76
    %1055 = vmatprep.subr.mxu0 %v81
    %1056 = vmatpush1.msra.mxu0 %v80
    %1057 = vmatprep.subr.mxu0 %v85
    %1058 = vmatpush1.msra.mxu0 %v84
    %1059 = vmatprep.subr.mxu0 %v89
    %1060 = vmatpush1.msra.mxu0 %v88
    %1061 = vmatprep.subr.mxu0 %v93
    %1062 = vmatpush1.msra.mxu0 %v92
    %1063 = vmatprep.subr.mxu0 %v97
    %1064 = vmatpush1.msra.mxu0 %v96
    %1065 = vmatprep.subr.mxu0 %v101
    %1066 = vmatpush1.msra.mxu0 %v100
    %1067 = vmatprep.subr.mxu0 %v105
    %1068 = vmatpush1.msra.mxu0 %v104
    %1069 = vmatprep.subr.mxu0 %v109
    %1070 = vmatpush1.msra.mxu0 %v108
    %1071 = vmatprep.subr.mxu0 %v113
    %1072 = vmatpush1.msra.mxu0 %v112
    %1073 = vmatprep.subr.mxu0 %v117
    %1074 = vmatpush1.msra.mxu0 %v116
    %1075 = vmatprep.subr.mxu0 0.0
    %1076 = vmatpush1.msra.mxu0 0.0
    %1077 = vmatprep.subr.mxu0 0.0
    %1078 = vmatpush1.msra.mxu0 0.0
    %1079 = vmatprep.subr.mxu0 0.0
    %1080 = vmatpush1.msra.mxu0 0.0
    %1081 = vmatprep.subr.mxu0 0.0
    %1082 = vmatpush1.msra.mxu0 0.0
    %1083 = vmatprep.subr.mxu0 0.0
    %1084 = vmatpush1.msra.mxu0 0.0
    %1085 = vmatprep.subr.mxu0 0.0
    %1086 = vmatpush1.msra.mxu0 0.0
    %1087 = vmatprep.subr.mxu0 0.0
    %1088 = vmatpush1.msra.mxu0 0.0
    %1089 = vmatprep.subr.mxu0 0.0
    %1090 = vmatpush1.msra.mxu0 0.0
    %1091 = vmatprep.subr.mxu0 0.0
    %1092 = vmatpush1.msra.mxu0 0.0
    %1093 = vmatprep.subr.mxu0 0.0
    %1094 = vmatpush1.msra.mxu0 0.0
    %1095 = vmatprep.subr.mxu0 0.0
    %1096 = vmatpush1.msra.mxu0 0.0
    %1097 = vmatprep.subr.mxu0 0.0
    %1098 = vmatpush1.msra.mxu0 0.0
    %1099 = vmatprep.subr.mxu0 0.0
    %1100 = vmatpush1.msra.mxu0 0.0
    %1101 = vmatprep.subr.mxu0 0.0
    %1102 = vmatpush1.msra.mxu0 0.0
    %1103 = vmatprep.subr.mxu0 0.0
    %1104 = vmatpush1.msra.mxu0 0.0
    %1105 = vmatprep.subr.mxu0 0.0
    %1106 = vmatpush1.msra.mxu0 0.0
    %1107 = vmatprep.mubr.f32.mxu0 0.0
    %1108 = vmatmul.mubr.f32.gmra.mrb[0].mxu0 %v1041
    %v1109 = vpop.f32.mrb[0].mxu0
    %v1110 = vadd.f32 0.0, %v1109
    %v1111 = vpop.f32.mrb[0].mxu0
    %v1112 = vadd.f32 0.0, %v1111
    %1113 = vdwg.mxu0
    %1114 = vmatprep.subr.mxu0 %v59
    %1115 = vmatpush1.msra.mxu0 %v58
    %1116 = vmatprep.subr.mxu0 %v63
    %1117 = vmatpush1.msra.mxu0 %v62
    %1118 = vmatprep.subr.mxu0 %v67
    %1119 = vmatpush1.msra.mxu0 %v66
    %1120 = vmatprep.subr.mxu0 %v71
    %1121 = vmatpush1.msra.mxu0 %v70
    %1122 = vmatprep.subr.mxu0 %v75
    %1123 = vmatpush1.msra.mxu0 %v74
    %1124 = vmatprep.subr.mxu0 %v79
    %1125 = vmatpush1.msra.mxu0 %v78
    %1126 = vmatprep.subr.mxu0 %v83
    %1127 = vmatpush1.msra.mxu0 %v82
    %1128 = vmatprep.subr.mxu0 %v87
    %1129 = vmatpush1.msra.mxu0 %v86
    %1130 = vmatprep.subr.mxu0 %v91
    %1131 = vmatpush1.msra.mxu0 %v90
    %1132 = vmatprep.subr.mxu0 %v95
    %1133 = vmatpush1.msra.mxu0 %v94
    %1134 = vmatprep.subr.mxu0 %v99
    %1135 = vmatpush1.msra.mxu0 %v98
    %1136 = vmatprep.subr.mxu0 %v103
    %1137 = vmatpush1.msra.mxu0 %v102
    %1138 = vmatprep.subr.mxu0 %v107
    %1139 = vmatpush1.msra.mxu0 %v106
    %1140 = vmatprep.subr.mxu0 %v111
    %1141 = vmatpush1.msra.mxu0 %v110
    %1142 = vmatprep.subr.mxu0 %v115
    %1143 = vmatpush1.msra.mxu0 %v114
    %1144 = vmatprep.subr.mxu0 %v119
    %1145 = vmatpush1.msra.mxu0 %v118
    %1146 = vmatprep.subr.mxu0 0.0
    %1147 = vmatpush1.msra.mxu0 0.0
    %1148 = vmatprep.subr.mxu0 0.0
    %1149 = vmatpush1.msra.mxu0 0.0
    %1150 = vmatprep.subr.mxu0 0.0
    %1151 = vmatpush1.msra.mxu0 0.0
    %1152 = vmatprep.subr.mxu0 0.0
    %1153 = vmatpush1.msra.mxu0 0.0
    %1154 = vmatprep.subr.mxu0 0.0
    %1155 = vmatpush1.msra.mxu0 0.0
    %1156 = vmatprep.subr.mxu0 0.0
    %1157 = vmatpush1.msra.mxu0 0.0
    %1158 = vmatprep.subr.mxu0 0.0
    %1159 = vmatpush1.msra.mxu0 0.0
    %1160 = vmatprep.subr.mxu0 0.0
    %1161 = vmatpush1.msra.mxu0 0.0
    %1162 = vmatprep.subr.mxu0 0.0
    %1163 = vmatpush1.msra.mxu0 0.0
    %1164 = vmatprep.subr.mxu0 0.0
    %1165 = vmatpush1.msra.mxu0 0.0
    %1166 = vmatprep.subr.mxu0 0.0
    %1167 = vmatpush1.msra.mxu0 0.0
    %1168 = vmatprep.subr.mxu0 0.0
    %1169 = vmatpush1.msra.mxu0 0.0
    %1170 = vmatprep.subr.mxu0 0.0
    %1171 = vmatpush1.msra.mxu0 0.0
    %1172 = vmatprep.subr.mxu0 0.0
    %1173 = vmatpush1.msra.mxu0 0.0
    %1174 = vmatprep.subr.mxu0 0.0
    %1175 = vmatpush1.msra.mxu0 0.0
    %1176 = vmatprep.subr.mxu0 0.0
    %1177 = vmatpush1.msra.mxu0 0.0
    %1178 = vmatprep.mubr.f32.mxu0 0.0
    %1179 = vmatmul.mubr.f32.gmra.mrb[0].mxu0 %v1041
    %v1180 = vpop.f32.mrb[0].mxu0
    %v1181 = vadd.f32 0.0, %v1180
    %v1182 = vpop.f32.mrb[0].mxu0
    %v1183 = vadd.f32 0.0, %v1182
    %1184 = vdwg.mxu0
    %v1185 = vadd.f32 %v480, %v1110
    %v1186 = vadd.f32 %v481, %v1112
    %v1187 = vadd.f32 %v482, %v1181
    %v1188 = vadd.f32 %v483, %v1183
    %v1189 = vmul.f32 %v1185, 0.5
    %v1190 = vmul.f32 %v1186, 0.5
    %v1191 = vmul.f32 %v1187, 0.5
    %v1192 = vtanh.pop %v1189
    %v1193 = vtanh.pop %v1190
    %v1194 = vtanh.pop %v1191
    %v1195 = vmul.f32 %v1192, 0.5
    %v1196 = vmul.f32 %v1193, 0.5
    %v1197 = vmul.f32 %v1194, 0.5
    %v1198 = vadd.f32 %v1195, 0.5
    %v1199 = vadd.f32 %v1196, 0.5
    %v1200 = vadd.f32 %v1197, 0.5
    %v1201 = vtanh.pop %v1188
    %v1202 = vmul.f32 %v1199, %v1042
    %v1203 = vmul.f32 %v1198, %v1201
    %v1204 = vadd.f32 %v1202, %v1203
    %v1205 = vtanh.pop %v1204
    %v1206 = vmul.f32 %v1200, %v1205
    %vm1207 = vcmp.gt.s32.totalorder %v55, 3
    %v1208 = vsel %vm1207, 1, 0
    %1209 = vset.pattern.permute.xlu0 0
    %1210 = vperm.xlu0 %1209, %v1208
    %v1211 = vpop.permute.xlu0 %1210
    %vm1212 = vcmp.eq.s32.totalorder %v1211, 1
    %vm1213 = vmand %vm411, %vm1212
    %vm1214 = vcmp.gt.s32.totalorder %v55, 4
    %v1215 = vsel %vm1214, 1, 0
    %1216 = vset.pattern.permute.xlu0 0
    %1217 = vperm.xlu0 %1216, %v1215
    %v1218 = vpop.permute.xlu0 %1217
    %vm1219 = vcmp.eq.s32.totalorder %v1218, 1
    %vm1220 = vmand %vm412, %vm1219
    %vm1221 = vmor %vm1213, %vm1220
    %v1222 = vsel %vm1221, %v1206, %v1041
    %v1223 = vsel %vm1221, %v1204, %v1042
    %1224 = vmatprep.subr.mxu0 %v57
    %1225 = vmatpush1.msra.mxu0 %v56
    %1226 = vmatprep.subr.mxu0 %v61
    %1227 = vmatpush1.msra.mxu0 %v60
    %1228 = vmatprep.subr.mxu0 %v65
    %1229 = vmatpush1.msra.mxu0 %v64
    %1230 = vmatprep.subr.mxu0 %v69
    %1231 = vmatpush1.msra.mxu0 %v68
    %1232 = vmatprep.subr.mxu0 %v73
    %1233 = vmatpush1.msra.mxu0 %v72
    %1234 = vmatprep.subr.mxu0 %v77
    %1235 = vmatpush1.msra.mxu0 %v76
    %1236 = vmatprep.subr.mxu0 %v81
    %1237 = vmatpush1.msra.mxu0 %v80
    %1238 = vmatprep.subr.mxu0 %v85
    %1239 = vmatpush1.msra.mxu0 %v84
    %1240 = vmatprep.subr.mxu0 %v89
    %1241 = vmatpush1.msra.mxu0 %v88
    %1242 = vmatprep.subr.mxu0 %v93
    %1243 = vmatpush1.msra.mxu0 %v92
    %1244 = vmatprep.subr.mxu0 %v97
    %1245 = vmatpush1.msra.mxu0 %v96
    %1246 = vmatprep.subr.mxu0 %v101
    %1247 = vmatpush1.msra.mxu0 %v100
    %1248 = vmatprep.subr.mxu0 %v105
    %1249 = vmatpush1.msra.mxu0 %v104
    %1250 = vmatprep.subr.mxu0 %v109
    %1251 = vmatpush1.msra.mxu0 %v108
    %1252 = vmatprep.subr.mxu0 %v113
    %1253 = vmatpush1.msra.mxu0 %v112
    %1254 = vmatprep.subr.mxu0 %v117
    %1255 = vmatpush1.msra.mxu0 %v116
    %1256 = vmatprep.subr.mxu0 0.0
    %1257 = vmatpush1.msra.mxu0 0.0
    %1258 = vmatprep.subr.mxu0 0.0
    %1259 = vmatpush1.msra.mxu0 0.0
    %1260 = vmatprep.subr.mxu0 0.0
    %1261 = vmatpush1.msra.mxu0 0.0
    %1262 = vmatprep.subr.mxu0 0.0
    %1263 = vmatpush1.msra.mxu0 0.0
    %1264 = vmatprep.subr.mxu0 0.0
    %1265 = vmatpush1.msra.mxu0 0.0
    %1266 = vmatprep.subr.mxu0 0.0
    %1267 = vmatpush1.msra.mxu0 0.0
    %1268 = vmatprep.subr.mxu0 0.0
    %1269 = vmatpush1.msra.mxu0 0.0
    %1270 = vmatprep.subr.mxu0 0.0
    %1271 = vmatpush1.msra.mxu0 0.0
    %1272 = vmatprep.subr.mxu0 0.0
    %1273 = vmatpush1.msra.mxu0 0.0
    %1274 = vmatprep.subr.mxu0 0.0
    %1275 = vmatpush1.msra.mxu0 0.0
    %1276 = vmatprep.subr.mxu0 0.0
    %1277 = vmatpush1.msra.mxu0 0.0
    %1278 = vmatprep.subr.mxu0 0.0
    %1279 = vmatpush1.msra.mxu0 0.0
    %1280 = vmatprep.subr.mxu0 0.0
    %1281 = vmatpush1.msra.mxu0 0.0
    %1282 = vmatprep.subr.mxu0 0.0
    %1283 = vmatpush1.msra.mxu0 0.0
    %1284 = vmatprep.subr.mxu0 0.0
    %1285 = vmatpush1.msra.mxu0 0.0
    %1286 = vmatprep.subr.mxu0 0.0
    %1287 = vmatpush1.msra.mxu0 0.0
    %1288 = vmatprep.mubr.f32.mxu0 0.0
    %1289 = vmatmul.mubr.f32.gmra.mrb[0].mxu0 %v1222
    %v1290 = vpop.f32.mrb[0].mxu0
    %v1291 = vadd.f32 0.0, %v1290
    %v1292 = vpop.f32.mrb[0].mxu0
    %v1293 = vadd.f32 0.0, %v1292
    %1294 = vdwg.mxu0
    %1295 = vmatprep.subr.mxu0 %v59
    %1296 = vmatpush1.msra.mxu0 %v58
    %1297 = vmatprep.subr.mxu0 %v63
    %1298 = vmatpush1.msra.mxu0 %v62
    %1299 = vmatprep.subr.mxu0 %v67
    %1300 = vmatpush1.msra.mxu0 %v66
    %1301 = vmatprep.subr.mxu0 %v71
    %1302 = vmatpush1.msra.mxu0 %v70
    %1303 = vmatprep.subr.mxu0 %v75
    %1304 = vmatpush1.msra.mxu0 %v74
    %1305 = vmatprep.subr.mxu0 %v79
    %1306 = vmatpush1.msra.mxu0 %v78
    %1307 = vmatprep.subr.mxu0 %v83
    %1308 = vmatpush1.msra.mxu0 %v82
    %1309 = vmatprep.subr.mxu0 %v87
    %1310 = vmatpush1.msra.mxu0 %v86
    %1311 = vmatprep.subr.mxu0 %v91
    %1312 = vmatpush1.msra.mxu0 %v90
    %1313 = vmatprep.subr.mxu0 %v95
    %1314 = vmatpush1.msra.mxu0 %v94
    %1315 = vmatprep.subr.mxu0 %v99
    %1316 = vmatpush1.msra.mxu0 %v98
    %1317 = vmatprep.subr.mxu0 %v103
    %1318 = vmatpush1.msra.mxu0 %v102
    %1319 = vmatprep.subr.mxu0 %v107
    %1320 = vmatpush1.msra.mxu0 %v106
    %1321 = vmatprep.subr.mxu0 %v111
    %1322 = vmatpush1.msra.mxu0 %v110
    %1323 = vmatprep.subr.mxu0 %v115
    %1324 = vmatpush1.msra.mxu0 %v114
    %1325 = vmatprep.subr.mxu0 %v119
    %1326 = vmatpush1.msra.mxu0 %v118
    %1327 = vmatprep.subr.mxu0 0.0
    %1328 = vmatpush1.msra.mxu0 0.0
    %1329 = vmatprep.subr.mxu0 0.0
    %1330 = vmatpush1.msra.mxu0 0.0
    %1331 = vmatprep.subr.mxu0 0.0
    %1332 = vmatpush1.msra.mxu0 0.0
    %1333 = vmatprep.subr.mxu0 0.0
    %1334 = vmatpush1.msra.mxu0 0.0
    %1335 = vmatprep.subr.mxu0 0.0
    %1336 = vmatpush1.msra.mxu0 0.0
    %1337 = vmatprep.subr.mxu0 0.0
    %1338 = vmatpush1.msra.mxu0 0.0
    %1339 = vmatprep.subr.mxu0 0.0
    %1340 = vmatpush1.msra.mxu0 0.0
    %1341 = vmatprep.subr.mxu0 0.0
    %1342 = vmatpush1.msra.mxu0 0.0
    %1343 = vmatprep.subr.mxu0 0.0
    %1344 = vmatpush1.msra.mxu0 0.0
    %1345 = vmatprep.subr.mxu0 0.0
    %1346 = vmatpush1.msra.mxu0 0.0
    %1347 = vmatprep.subr.mxu0 0.0
    %1348 = vmatpush1.msra.mxu0 0.0
    %1349 = vmatprep.subr.mxu0 0.0
    %1350 = vmatpush1.msra.mxu0 0.0
    %1351 = vmatprep.subr.mxu0 0.0
    %1352 = vmatpush1.msra.mxu0 0.0
    %1353 = vmatprep.subr.mxu0 0.0
    %1354 = vmatpush1.msra.mxu0 0.0
    %1355 = vmatprep.subr.mxu0 0.0
    %1356 = vmatpush1.msra.mxu0 0.0
    %1357 = vmatprep.subr.mxu0 0.0
    %1358 = vmatpush1.msra.mxu0 0.0
    %1359 = vmatprep.mubr.f32.mxu0 0.0
    %1360 = vmatmul.mubr.f32.gmra.mrb[0].mxu0 %v1222
    %v1361 = vpop.f32.mrb[0].mxu0
    %v1362 = vadd.f32 0.0, %v1361
    %v1363 = vpop.f32.mrb[0].mxu0
    %v1364 = vadd.f32 0.0, %v1363
    %1365 = vdwg.mxu0
    %v1366 = vadd.f32 %v484, %v1291
    %v1367 = vadd.f32 %v485, %v1293
    %v1368 = vadd.f32 %v486, %v1362
    %v1369 = vadd.f32 %v487, %v1364
    %v1370 = vmul.f32 %v1366, 0.5
    %v1371 = vmul.f32 %v1367, 0.5
    %v1372 = vmul.f32 %v1368, 0.5
    %v1373 = vtanh.pop %v1370
    %v1374 = vtanh.pop %v1371
    %v1375 = vtanh.pop %v1372
    %v1376 = vmul.f32 %v1373, 0.5
    %v1377 = vmul.f32 %v1374, 0.5
    %v1378 = vmul.f32 %v1375, 0.5
    %v1379 = vadd.f32 %v1376, 0.5
    %v1380 = vadd.f32 %v1377, 0.5
    %v1381 = vadd.f32 %v1378, 0.5
    %v1382 = vtanh.pop %v1369
    %v1383 = vmul.f32 %v1380, %v1223
    %v1384 = vmul.f32 %v1379, %v1382
    %v1385 = vadd.f32 %v1383, %v1384
    %v1386 = vtanh.pop %v1385
    %v1387 = vmul.f32 %v1381, %v1386
    %vm1388 = vmand %vm411, %vm1219
    %vm1389 = vmand %vm412, %vm1212
    %vm1390 = vmor %vm1388, %vm1389
    %v1391 = vsel %vm1390, %v1387, %v1222
    %v1392 = vsel %vm1390, %v1385, %v1223
    %1393 = vmatprep.subr.mxu0 %v57
    %1394 = vmatpush1.msra.mxu0 %v56
    %1395 = vmatprep.subr.mxu0 %v61
    %1396 = vmatpush1.msra.mxu0 %v60
    %1397 = vmatprep.subr.mxu0 %v65
    %1398 = vmatpush1.msra.mxu0 %v64
    %1399 = vmatprep.subr.mxu0 %v69
    %1400 = vmatpush1.msra.mxu0 %v68
    %1401 = vmatprep.subr.mxu0 %v73
    %1402 = vmatpush1.msra.mxu0 %v72
    %1403 = vmatprep.subr.mxu0 %v77
    %1404 = vmatpush1.msra.mxu0 %v76
    %1405 = vmatprep.subr.mxu0 %v81
    %1406 = vmatpush1.msra.mxu0 %v80
    %1407 = vmatprep.subr.mxu0 %v85
    %1408 = vmatpush1.msra.mxu0 %v84
    %1409 = vmatprep.subr.mxu0 %v89
    %1410 = vmatpush1.msra.mxu0 %v88
    %1411 = vmatprep.subr.mxu0 %v93
    %1412 = vmatpush1.msra.mxu0 %v92
    %1413 = vmatprep.subr.mxu0 %v97
    %1414 = vmatpush1.msra.mxu0 %v96
    %1415 = vmatprep.subr.mxu0 %v101
    %1416 = vmatpush1.msra.mxu0 %v100
    %1417 = vmatprep.subr.mxu0 %v105
    %1418 = vmatpush1.msra.mxu0 %v104
    %1419 = vmatprep.subr.mxu0 %v109
    %1420 = vmatpush1.msra.mxu0 %v108
    %1421 = vmatprep.subr.mxu0 %v113
    %1422 = vmatpush1.msra.mxu0 %v112
    %1423 = vmatprep.subr.mxu0 %v117
    %1424 = vmatpush1.msra.mxu0 %v116
    %1425 = vmatprep.subr.mxu0 0.0
    %1426 = vmatpush1.msra.mxu0 0.0
    %1427 = vmatprep.subr.mxu0 0.0
    %1428 = vmatpush1.msra.mxu0 0.0
    %1429 = vmatprep.subr.mxu0 0.0
    %1430 = vmatpush1.msra.mxu0 0.0
    %1431 = vmatprep.subr.mxu0 0.0
    %1432 = vmatpush1.msra.mxu0 0.0
    %1433 = vmatprep.subr.mxu0 0.0
    %1434 = vmatpush1.msra.mxu0 0.0
    %1435 = vmatprep.subr.mxu0 0.0
    %1436 = vmatpush1.msra.mxu0 0.0
    %1437 = vmatprep.subr.mxu0 0.0
    %1438 = vmatpush1.msra.mxu0 0.0
    %1439 = vmatprep.subr.mxu0 0.0
    %1440 = vmatpush1.msra.mxu0 0.0
    %1441 = vmatprep.subr.mxu0 0.0
    %1442 = vmatpush1.msra.mxu0 0.0
    %1443 = vmatprep.subr.mxu0 0.0
    %1444 = vmatpush1.msra.mxu0 0.0
    %1445 = vmatprep.subr.mxu0 0.0
    %1446 = vmatpush1.msra.mxu0 0.0
    %1447 = vmatprep.subr.mxu0 0.0
    %1448 = vmatpush1.msra.mxu0 0.0
    %1449 = vmatprep.subr.mxu0 0.0
    %1450 = vmatpush1.msra.mxu0 0.0
    %1451 = vmatprep.subr.mxu0 0.0
    %1452 = vmatpush1.msra.mxu0 0.0
    %1453 = vmatprep.subr.mxu0 0.0
    %1454 = vmatpush1.msra.mxu0 0.0
    %1455 = vmatprep.subr.mxu0 0.0
    %1456 = vmatpush1.msra.mxu0 0.0
    %1457 = vmatprep.mubr.f32.mxu0 0.0
    %1458 = vmatmul.mubr.f32.gmra.mrb[0].mxu0 %v1391
    %v1459 = vpop.f32.mrb[0].mxu0
    %v1460 = vadd.f32 0.0, %v1459
    %v1461 = vpop.f32.mrb[0].mxu0
    %v1462 = vadd.f32 0.0, %v1461
    %1463 = vdwg.mxu0
    %1464 = vmatprep.subr.mxu0 %v59
    %1465 = vmatpush1.msra.mxu0 %v58
    %1466 = vmatprep.subr.mxu0 %v63
    %1467 = vmatpush1.msra.mxu0 %v62
    %1468 = vmatprep.subr.mxu0 %v67
    %1469 = vmatpush1.msra.mxu0 %v66
    %1470 = vmatprep.subr.mxu0 %v71
    %1471 = vmatpush1.msra.mxu0 %v70
    %1472 = vmatprep.subr.mxu0 %v75
    %1473 = vmatpush1.msra.mxu0 %v74
    %1474 = vmatprep.subr.mxu0 %v79
    %1475 = vmatpush1.msra.mxu0 %v78
    %1476 = vmatprep.subr.mxu0 %v83
    %1477 = vmatpush1.msra.mxu0 %v82
    %1478 = vmatprep.subr.mxu0 %v87
    %1479 = vmatpush1.msra.mxu0 %v86
    %1480 = vmatprep.subr.mxu0 %v91
    %1481 = vmatpush1.msra.mxu0 %v90
    %1482 = vmatprep.subr.mxu0 %v95
    %1483 = vmatpush1.msra.mxu0 %v94
    %1484 = vmatprep.subr.mxu0 %v99
    %1485 = vmatpush1.msra.mxu0 %v98
    %1486 = vmatprep.subr.mxu0 %v103
    %1487 = vmatpush1.msra.mxu0 %v102
    %1488 = vmatprep.subr.mxu0 %v107
    %1489 = vmatpush1.msra.mxu0 %v106
    %1490 = vmatprep.subr.mxu0 %v111
    %1491 = vmatpush1.msra.mxu0 %v110
    %1492 = vmatprep.subr.mxu0 %v115
    %1493 = vmatpush1.msra.mxu0 %v114
    %1494 = vmatprep.subr.mxu0 %v119
    %1495 = vmatpush1.msra.mxu0 %v118
    %1496 = vmatprep.subr.mxu0 0.0
    %1497 = vmatpush1.msra.mxu0 0.0
    %1498 = vmatprep.subr.mxu0 0.0
    %1499 = vmatpush1.msra.mxu0 0.0
    %1500 = vmatprep.subr.mxu0 0.0
    %1501 = vmatpush1.msra.mxu0 0.0
    %1502 = vmatprep.subr.mxu0 0.0
    %1503 = vmatpush1.msra.mxu0 0.0
    %1504 = vmatprep.subr.mxu0 0.0
    %1505 = vmatpush1.msra.mxu0 0.0
    %1506 = vmatprep.subr.mxu0 0.0
    %1507 = vmatpush1.msra.mxu0 0.0
    %1508 = vmatprep.subr.mxu0 0.0
    %1509 = vmatpush1.msra.mxu0 0.0
    %1510 = vmatprep.subr.mxu0 0.0
    %1511 = vmatpush1.msra.mxu0 0.0
    %1512 = vmatprep.subr.mxu0 0.0
    %1513 = vmatpush1.msra.mxu0 0.0
    %1514 = vmatprep.subr.mxu0 0.0
    %1515 = vmatpush1.msra.mxu0 0.0
    %1516 = vmatprep.subr.mxu0 0.0
    %1517 = vmatpush1.msra.mxu0 0.0
    %1518 = vmatprep.subr.mxu0 0.0
    %1519 = vmatpush1.msra.mxu0 0.0
    %1520 = vmatprep.subr.mxu0 0.0
    %1521 = vmatpush1.msra.mxu0 0.0
    %1522 = vmatprep.subr.mxu0 0.0
    %1523 = vmatpush1.msra.mxu0 0.0
    %1524 = vmatprep.subr.mxu0 0.0
    %1525 = vmatpush1.msra.mxu0 0.0
    %1526 = vmatprep.subr.mxu0 0.0
    %1527 = vmatpush1.msra.mxu0 0.0
    %1528 = vmatprep.mubr.f32.mxu0 0.0
    %1529 = vmatmul.mubr.f32.gmra.mrb[0].mxu0 %v1391
    %v1530 = vpop.f32.mrb[0].mxu0
    %v1531 = vadd.f32 0.0, %v1530
    %v1532 = vpop.f32.mrb[0].mxu0
    %v1533 = vadd.f32 0.0, %v1532
    %1534 = vdwg.mxu0
    %v1535 = vadd.f32 %v488, %v1460
    %v1536 = vadd.f32 %v489, %v1462
    %v1537 = vadd.f32 %v490, %v1531
    %v1538 = vadd.f32 %v491, %v1533
    %v1539 = vmul.f32 %v1535, 0.5
    %v1540 = vmul.f32 %v1536, 0.5
    %v1541 = vmul.f32 %v1537, 0.5
    %v1542 = vtanh.pop %v1539
    %v1543 = vtanh.pop %v1540
    %v1544 = vtanh.pop %v1541
    %v1545 = vmul.f32 %v1542, 0.5
    %v1546 = vmul.f32 %v1543, 0.5
    %v1547 = vmul.f32 %v1544, 0.5
    %v1548 = vadd.f32 %v1545, 0.5
    %v1549 = vadd.f32 %v1546, 0.5
    %v1550 = vadd.f32 %v1547, 0.5
    %v1551 = vtanh.pop %v1538
    %v1552 = vmul.f32 %v1549, %v1392
    %v1553 = vmul.f32 %v1548, %v1551
    %v1554 = vadd.f32 %v1552, %v1553
    %v1555 = vtanh.pop %v1554
    %v1556 = vmul.f32 %v1550, %v1555
    %vm1557 = vmand %vm411, %vm1038
    %vm1558 = vmand %vm412, %vm1031
    %vm1559 = vmor %vm1557, %vm1558
    %v1560 = vsel %vm1559, %v1556, %v1391
    %v1561 = vsel %vm1559, %v1554, %v1392
    %1562 = vmatprep.subr.mxu0 %v57
    %1563 = vmatpush1.msra.mxu0 %v56
    %1564 = vmatprep.subr.mxu0 %v61
    %1565 = vmatpush1.msra.mxu0 %v60
    %1566 = vmatprep.subr.mxu0 %v65
    %1567 = vmatpush1.msra.mxu0 %v64
    %1568 = vmatprep.subr.mxu0 %v69
    %1569 = vmatpush1.msra.mxu0 %v68
    %1570 = vmatprep.subr.mxu0 %v73
    %1571 = vmatpush1.msra.mxu0 %v72
    %1572 = vmatprep.subr.mxu0 %v77
    %1573 = vmatpush1.msra.mxu0 %v76
    %1574 = vmatprep.subr.mxu0 %v81
    %1575 = vmatpush1.msra.mxu0 %v80
    %1576 = vmatprep.subr.mxu0 %v85
    %1577 = vmatpush1.msra.mxu0 %v84
    %1578 = vmatprep.subr.mxu0 %v89
    %1579 = vmatpush1.msra.mxu0 %v88
    %1580 = vmatprep.subr.mxu0 %v93
    %1581 = vmatpush1.msra.mxu0 %v92
    %1582 = vmatprep.subr.mxu0 %v97
    %1583 = vmatpush1.msra.mxu0 %v96
    %1584 = vmatprep.subr.mxu0 %v101
    %1585 = vmatpush1.msra.mxu0 %v100
    %1586 = vmatprep.subr.mxu0 %v105
    %1587 = vmatpush1.msra.mxu0 %v104
    %1588 = vmatprep.subr.mxu0 %v109
    %1589 = vmatpush1.msra.mxu0 %v108
    %1590 = vmatprep.subr.mxu0 %v113
    %1591 = vmatpush1.msra.mxu0 %v112
    %1592 = vmatprep.subr.mxu0 %v117
    %1593 = vmatpush1.msra.mxu0 %v116
    %1594 = vmatprep.subr.mxu0 0.0
    %1595 = vmatpush1.msra.mxu0 0.0
    %1596 = vmatprep.subr.mxu0 0.0
    %1597 = vmatpush1.msra.mxu0 0.0
    %1598 = vmatprep.subr.mxu0 0.0
    %1599 = vmatpush1.msra.mxu0 0.0
    %1600 = vmatprep.subr.mxu0 0.0
    %1601 = vmatpush1.msra.mxu0 0.0
    %1602 = vmatprep.subr.mxu0 0.0
    %1603 = vmatpush1.msra.mxu0 0.0
    %1604 = vmatprep.subr.mxu0 0.0
    %1605 = vmatpush1.msra.mxu0 0.0
    %1606 = vmatprep.subr.mxu0 0.0
    %1607 = vmatpush1.msra.mxu0 0.0
    %1608 = vmatprep.subr.mxu0 0.0
    %1609 = vmatpush1.msra.mxu0 0.0
    %1610 = vmatprep.subr.mxu0 0.0
    %1611 = vmatpush1.msra.mxu0 0.0
    %1612 = vmatprep.subr.mxu0 0.0
    %1613 = vmatpush1.msra.mxu0 0.0
    %1614 = vmatprep.subr.mxu0 0.0
    %1615 = vmatpush1.msra.mxu0 0.0
    %1616 = vmatprep.subr.mxu0 0.0
    %1617 = vmatpush1.msra.mxu0 0.0
    %1618 = vmatprep.subr.mxu0 0.0
    %1619 = vmatpush1.msra.mxu0 0.0
    %1620 = vmatprep.subr.mxu0 0.0
    %1621 = vmatpush1.msra.mxu0 0.0
    %1622 = vmatprep.subr.mxu0 0.0
    %1623 = vmatpush1.msra.mxu0 0.0
    %1624 = vmatprep.subr.mxu0 0.0
    %1625 = vmatpush1.msra.mxu0 0.0
    %1626 = vmatprep.mubr.f32.mxu0 0.0
    %1627 = vmatmul.mubr.f32.gmra.mrb[0].mxu0 %v1560
    %v1628 = vpop.f32.mrb[0].mxu0
    %v1629 = vadd.f32 0.0, %v1628
    %v1630 = vpop.f32.mrb[0].mxu0
    %v1631 = vadd.f32 0.0, %v1630
    %1632 = vdwg.mxu0
    %1633 = vmatprep.subr.mxu0 %v59
    %1634 = vmatpush1.msra.mxu0 %v58
    %1635 = vmatprep.subr.mxu0 %v63
    %1636 = vmatpush1.msra.mxu0 %v62
    %1637 = vmatprep.subr.mxu0 %v67
    %1638 = vmatpush1.msra.mxu0 %v66
    %1639 = vmatprep.subr.mxu0 %v71
    %1640 = vmatpush1.msra.mxu0 %v70
    %1641 = vmatprep.subr.mxu0 %v75
    %1642 = vmatpush1.msra.mxu0 %v74
    %1643 = vmatprep.subr.mxu0 %v79
    %1644 = vmatpush1.msra.mxu0 %v78
    %1645 = vmatprep.subr.mxu0 %v83
    %1646 = vmatpush1.msra.mxu0 %v82
    %1647 = vmatprep.subr.mxu0 %v87
    %1648 = vmatpush1.msra.mxu0 %v86
    %1649 = vmatprep.subr.mxu0 %v91
    %1650 = vmatpush1.msra.mxu0 %v90
    %1651 = vmatprep.subr.mxu0 %v95
    %1652 = vmatpush1.msra.mxu0 %v94
    %1653 = vmatprep.subr.mxu0 %v99
    %1654 = vmatpush1.msra.mxu0 %v98
    %1655 = vmatprep.subr.mxu0 %v103
    %1656 = vmatpush1.msra.mxu0 %v102
    %1657 = vmatprep.subr.mxu0 %v107
    %1658 = vmatpush1.msra.mxu0 %v106
    %1659 = vmatprep.subr.mxu0 %v111
    %1660 = vmatpush1.msra.mxu0 %v110
    %1661 = vmatprep.subr.mxu0 %v115
    %1662 = vmatpush1.msra.mxu0 %v114
    %1663 = vmatprep.subr.mxu0 %v119
    %1664 = vmatpush1.msra.mxu0 %v118
    %1665 = vmatprep.subr.mxu0 0.0
    %1666 = vmatpush1.msra.mxu0 0.0
    %1667 = vmatprep.subr.mxu0 0.0
    %1668 = vmatpush1.msra.mxu0 0.0
    %1669 = vmatprep.subr.mxu0 0.0
    %1670 = vmatpush1.msra.mxu0 0.0
    %1671 = vmatprep.subr.mxu0 0.0
    %1672 = vmatpush1.msra.mxu0 0.0
    %1673 = vmatprep.subr.mxu0 0.0
    %1674 = vmatpush1.msra.mxu0 0.0
    %1675 = vmatprep.subr.mxu0 0.0
    %1676 = vmatpush1.msra.mxu0 0.0
    %1677 = vmatprep.subr.mxu0 0.0
    %1678 = vmatpush1.msra.mxu0 0.0
    %1679 = vmatprep.subr.mxu0 0.0
    %1680 = vmatpush1.msra.mxu0 0.0
    %1681 = vmatprep.subr.mxu0 0.0
    %1682 = vmatpush1.msra.mxu0 0.0
    %1683 = vmatprep.subr.mxu0 0.0
    %1684 = vmatpush1.msra.mxu0 0.0
    %1685 = vmatprep.subr.mxu0 0.0
    %1686 = vmatpush1.msra.mxu0 0.0
    %1687 = vmatprep.subr.mxu0 0.0
    %1688 = vmatpush1.msra.mxu0 0.0
    %1689 = vmatprep.subr.mxu0 0.0
    %1690 = vmatpush1.msra.mxu0 0.0
    %1691 = vmatprep.subr.mxu0 0.0
    %1692 = vmatpush1.msra.mxu0 0.0
    %1693 = vmatprep.subr.mxu0 0.0
    %1694 = vmatpush1.msra.mxu0 0.0
    %1695 = vmatprep.subr.mxu0 0.0
    %1696 = vmatpush1.msra.mxu0 0.0
    %1697 = vmatprep.mubr.f32.mxu0 0.0
    %1698 = vmatmul.mubr.f32.gmra.mrb[0].mxu0 %v1560
    %v1699 = vpop.f32.mrb[0].mxu0
    %v1700 = vadd.f32 0.0, %v1699
    %v1701 = vpop.f32.mrb[0].mxu0
    %v1702 = vadd.f32 0.0, %v1701
    %1703 = vdwg.mxu0
    %v1704 = vadd.f32 %v492, %v1629
    %v1705 = vadd.f32 %v493, %v1631
    %v1706 = vadd.f32 %v494, %v1700
    %v1707 = vadd.f32 %v495, %v1702
    %v1708 = vmul.f32 %v1704, 0.5
    %v1709 = vmul.f32 %v1705, 0.5
    %v1710 = vmul.f32 %v1706, 0.5
    %v1711 = vtanh.pop %v1708
    %v1712 = vtanh.pop %v1709
    %v1713 = vtanh.pop %v1710
    %v1714 = vmul.f32 %v1711, 0.5
    %v1715 = vmul.f32 %v1712, 0.5
    %v1716 = vmul.f32 %v1713, 0.5
    %v1717 = vadd.f32 %v1714, 0.5
    %v1718 = vadd.f32 %v1715, 0.5
    %v1719 = vadd.f32 %v1716, 0.5
    %v1720 = vtanh.pop %v1707
    %v1721 = vmul.f32 %v1718, %v1561
    %v1722 = vmul.f32 %v1717, %v1720
    %v1723 = vadd.f32 %v1721, %v1722
    %v1724 = vtanh.pop %v1723
    %v1725 = vmul.f32 %v1719, %v1724
    %vm1726 = vmand %vm411, %vm857
    %vm1727 = vmand %vm412, %vm850
    %vm1728 = vmor %vm1726, %vm1727
    %v1729 = vsel %vm1728, %v1725, %v1560
    %v1730 = vsel %vm1728, %v1723, %v1561
    %1731 = vmatprep.subr.mxu0 %v57
    %1732 = vmatpush1.msra.mxu0 %v56
    %1733 = vmatprep.subr.mxu0 %v61
    %1734 = vmatpush1.msra.mxu0 %v60
    %1735 = vmatprep.subr.mxu0 %v65
    %1736 = vmatpush1.msra.mxu0 %v64
    %1737 = vmatprep.subr.mxu0 %v69
    %1738 = vmatpush1.msra.mxu0 %v68
    %1739 = vmatprep.subr.mxu0 %v73
    %1740 = vmatpush1.msra.mxu0 %v72
    %1741 = vmatprep.subr.mxu0 %v77
    %1742 = vmatpush1.msra.mxu0 %v76
    %1743 = vmatprep.subr.mxu0 %v81
    %1744 = vmatpush1.msra.mxu0 %v80
    %1745 = vmatprep.subr.mxu0 %v85
    %1746 = vmatpush1.msra.mxu0 %v84
    %1747 = vmatprep.subr.mxu0 %v89
    %1748 = vmatpush1.msra.mxu0 %v88
    %1749 = vmatprep.subr.mxu0 %v93
    %1750 = vmatpush1.msra.mxu0 %v92
    %1751 = vmatprep.subr.mxu0 %v97
    %1752 = vmatpush1.msra.mxu0 %v96
    %1753 = vmatprep.subr.mxu0 %v101
    %1754 = vmatpush1.msra.mxu0 %v100
    %1755 = vmatprep.subr.mxu0 %v105
    %1756 = vmatpush1.msra.mxu0 %v104
    %1757 = vmatprep.subr.mxu0 %v109
    %1758 = vmatpush1.msra.mxu0 %v108
    %1759 = vmatprep.subr.mxu0 %v113
    %1760 = vmatpush1.msra.mxu0 %v112
    %1761 = vmatprep.subr.mxu0 %v117
    %1762 = vmatpush1.msra.mxu0 %v116
    %1763 = vmatprep.subr.mxu0 0.0
    %1764 = vmatpush1.msra.mxu0 0.0
    %1765 = vmatprep.subr.mxu0 0.0
    %1766 = vmatpush1.msra.mxu0 0.0
    %1767 = vmatprep.subr.mxu0 0.0
    %1768 = vmatpush1.msra.mxu0 0.0
    %1769 = vmatprep.subr.mxu0 0.0
    %1770 = vmatpush1.msra.mxu0 0.0
    %1771 = vmatprep.subr.mxu0 0.0
    %1772 = vmatpush1.msra.mxu0 0.0
    %1773 = vmatprep.subr.mxu0 0.0
    %1774 = vmatpush1.msra.mxu0 0.0
    %1775 = vmatprep.subr.mxu0 0.0
    %1776 = vmatpush1.msra.mxu0 0.0
    %1777 = vmatprep.subr.mxu0 0.0
    %1778 = vmatpush1.msra.mxu0 0.0
    %1779 = vmatprep.subr.mxu0 0.0
    %1780 = vmatpush1.msra.mxu0 0.0
    %1781 = vmatprep.subr.mxu0 0.0
    %1782 = vmatpush1.msra.mxu0 0.0
    %1783 = vmatprep.subr.mxu0 0.0
    %1784 = vmatpush1.msra.mxu0 0.0
    %1785 = vmatprep.subr.mxu0 0.0
    %1786 = vmatpush1.msra.mxu0 0.0
    %1787 = vmatprep.subr.mxu0 0.0
    %1788 = vmatpush1.msra.mxu0 0.0
    %1789 = vmatprep.subr.mxu0 0.0
    %1790 = vmatpush1.msra.mxu0 0.0
    %1791 = vmatprep.subr.mxu0 0.0
    %1792 = vmatpush1.msra.mxu0 0.0
    %1793 = vmatprep.subr.mxu0 0.0
    %1794 = vmatpush1.msra.mxu0 0.0
    %1795 = vmatprep.mubr.f32.mxu0 0.0
    %1796 = vmatmul.mubr.f32.gmra.mrb[0].mxu0 %v1729
    %v1797 = vpop.f32.mrb[0].mxu0
    %v1798 = vadd.f32 0.0, %v1797
    %v1799 = vpop.f32.mrb[0].mxu0
    %v1800 = vadd.f32 0.0, %v1799
    %1801 = vdwg.mxu0
    %1802 = vmatprep.subr.mxu0 %v59
    %1803 = vmatpush1.msra.mxu0 %v58
    %1804 = vmatprep.subr.mxu0 %v63
    %1805 = vmatpush1.msra.mxu0 %v62
    %1806 = vmatprep.subr.mxu0 %v67
    %1807 = vmatpush1.msra.mxu0 %v66
    %1808 = vmatprep.subr.mxu0 %v71
    %1809 = vmatpush1.msra.mxu0 %v70
    %1810 = vmatprep.subr.mxu0 %v75
    %1811 = vmatpush1.msra.mxu0 %v74
    %1812 = vmatprep.subr.mxu0 %v79
    %1813 = vmatpush1.msra.mxu0 %v78
    %1814 = vmatprep.subr.mxu0 %v83
    %1815 = vmatpush1.msra.mxu0 %v82
    %1816 = vmatprep.subr.mxu0 %v87
    %1817 = vmatpush1.msra.mxu0 %v86
    %1818 = vmatprep.subr.mxu0 %v91
    %1819 = vmatpush1.msra.mxu0 %v90
    %1820 = vmatprep.subr.mxu0 %v95
    %1821 = vmatpush1.msra.mxu0 %v94
    %1822 = vmatprep.subr.mxu0 %v99
    %1823 = vmatpush1.msra.mxu0 %v98
    %1824 = vmatprep.subr.mxu0 %v103
    %1825 = vmatpush1.msra.mxu0 %v102
    %1826 = vmatprep.subr.mxu0 %v107
    %1827 = vmatpush1.msra.mxu0 %v106
    %1828 = vmatprep.subr.mxu0 %v111
    %1829 = vmatpush1.msra.mxu0 %v110
    %1830 = vmatprep.subr.mxu0 %v115
    %1831 = vmatpush1.msra.mxu0 %v114
    %1832 = vmatprep.subr.mxu0 %v119
    %1833 = vmatpush1.msra.mxu0 %v118
    %1834 = vmatprep.subr.mxu0 0.0
    %1835 = vmatpush1.msra.mxu0 0.0
    %1836 = vmatprep.subr.mxu0 0.0
    %1837 = vmatpush1.msra.mxu0 0.0
    %1838 = vmatprep.subr.mxu0 0.0
    %1839 = vmatpush1.msra.mxu0 0.0
    %1840 = vmatprep.subr.mxu0 0.0
    %1841 = vmatpush1.msra.mxu0 0.0
    %1842 = vmatprep.subr.mxu0 0.0
    %1843 = vmatpush1.msra.mxu0 0.0
    %1844 = vmatprep.subr.mxu0 0.0
    %1845 = vmatpush1.msra.mxu0 0.0
    %1846 = vmatprep.subr.mxu0 0.0
    %1847 = vmatpush1.msra.mxu0 0.0
    %1848 = vmatprep.subr.mxu0 0.0
    %1849 = vmatpush1.msra.mxu0 0.0
    %1850 = vmatprep.subr.mxu0 0.0
    %1851 = vmatpush1.msra.mxu0 0.0
    %1852 = vmatprep.subr.mxu0 0.0
    %1853 = vmatpush1.msra.mxu0 0.0
    %1854 = vmatprep.subr.mxu0 0.0
    %1855 = vmatpush1.msra.mxu0 0.0
    %1856 = vmatprep.subr.mxu0 0.0
    %1857 = vmatpush1.msra.mxu0 0.0
    %1858 = vmatprep.subr.mxu0 0.0
    %1859 = vmatpush1.msra.mxu0 0.0
    %1860 = vmatprep.subr.mxu0 0.0
    %1861 = vmatpush1.msra.mxu0 0.0
    %1862 = vmatprep.subr.mxu0 0.0
    %1863 = vmatpush1.msra.mxu0 0.0
    %1864 = vmatprep.subr.mxu0 0.0
    %1865 = vmatpush1.msra.mxu0 0.0
    %1866 = vmatprep.mubr.f32.mxu0 0.0
    %1867 = vmatmul.mubr.f32.gmra.mrb[0].mxu0 %v1729
    %v1868 = vpop.f32.mrb[0].mxu0
    %v1869 = vadd.f32 0.0, %v1868
    %v1870 = vpop.f32.mrb[0].mxu0
    %v1871 = vadd.f32 0.0, %v1870
    %1872 = vdwg.mxu0
    %v1873 = vadd.f32 %v496, %v1798
    %v1874 = vadd.f32 %v497, %v1800
    %v1875 = vadd.f32 %v498, %v1869
    %v1876 = vadd.f32 %v499, %v1871
    %v1877 = vmul.f32 %v1873, 0.5
    %v1878 = vmul.f32 %v1874, 0.5
    %v1879 = vmul.f32 %v1875, 0.5
    %v1880 = vtanh.pop %v1877
    %v1881 = vtanh.pop %v1878
    %v1882 = vtanh.pop %v1879
    %v1883 = vmul.f32 %v1880, 0.5
    %v1884 = vmul.f32 %v1881, 0.5
    %v1885 = vmul.f32 %v1882, 0.5
    %v1886 = vadd.f32 %v1883, 0.5
    %v1887 = vadd.f32 %v1884, 0.5
    %v1888 = vadd.f32 %v1885, 0.5
    %v1889 = vtanh.pop %v1876
    %v1890 = vmul.f32 %v1887, %v1730
    %v1891 = vmul.f32 %v1886, %v1889
    %v1892 = vadd.f32 %v1890, %v1891
    %v1893 = vtanh.pop %v1892
    %v1894 = vmul.f32 %v1888, %v1893
    %vm1895 = vmand %vm411, %vm676
    %vm1896 = vmand %vm412, %vm669
    %vm1897 = vmor %vm1895, %vm1896
    %v1898 = vsel %vm1897, %v1894, %v1729
    %v1899 = vld [vmem:[#allocation5] sm:$0xff]
    %v1900 = vld [vmem:[#allocation5 + $0x8] sm:$0xff]
    %v1901 = vld [vmem:[#allocation5 + $0x10] sm:$0xff]
    %v1902 = vld [vmem:[#allocation5 + $0x18] sm:$0xff]
    %v1903 = vld [vmem:[#allocation5 + $0x20] sm:$0xff]
    %v1904 = vld [vmem:[#allocation5 + $0x28] sm:$0xff]
    %v1905 = vld [vmem:[#allocation5 + $0x30] sm:$0xff]
    %v1906 = vld [vmem:[#allocation5 + $0x38] sm:$0xff]
    %v1907 = vld [vmem:[#allocation5 + $0x40] sm:$0xff]
    %v1908 = vld [vmem:[#allocation5 + $0x48] sm:$0xff]
    %v1909 = vld [vmem:[#allocation5 + $0x50] sm:$0xff]
    %v1910 = vld [vmem:[#allocation5 + $0x58] sm:$0xff]
    %v1911 = vld [vmem:[#allocation5 + $0x60] sm:$0xff]
    %v1912 = vld [vmem:[#allocation5 + $0x68] sm:$0xff]
    %v1913 = vld [vmem:[#allocation5 + $0x70] sm:$0xff]
    %v1914 = vld [vmem:[#allocation5 + $0x78] sm:$0xff]
    %v1915 = vld [vmem:[%s6] sm:$0x1]
    %v1917 = vlaneseq
    %v1918 = vshrl.u32 %v1917, 7
    %v1919 = vsub.s32 0, %v1918
    %v1920 = vrot.slane %v1915, %v1919
    %1922 = vmatprep.subr.mxu0 0.0
    %1923 = vmatpush1.msra.mxu0 %v1899
    %1924 = vmatprep.subr.mxu0 0.0
    %1925 = vmatpush1.msra.mxu0 %v1900
    %1926 = vmatprep.subr.mxu0 0.0
    %1927 = vmatpush1.msra.mxu0 %v1901
    %1928 = vmatprep.subr.mxu0 0.0
    %1929 = vmatpush1.msra.mxu0 %v1902
    %1930 = vmatprep.subr.mxu0 0.0
    %1931 = vmatpush1.msra.mxu0 %v1903
    %1932 = vmatprep.subr.mxu0 0.0
    %1933 = vmatpush1.msra.mxu0 %v1904
    %1934 = vmatprep.subr.mxu0 0.0
    %1935 = vmatpush1.msra.mxu0 %v1905
    %1936 = vmatprep.subr.mxu0 0.0
    %1937 = vmatpush1.msra.mxu0 %v1906
    %1938 = vmatprep.subr.mxu0 0.0
    %1939 = vmatpush1.msra.mxu0 %v1907
    %1940 = vmatprep.subr.mxu0 0.0
    %1941 = vmatpush1.msra.mxu0 %v1908
    %1942 = vmatprep.subr.mxu0 0.0
    %1943 = vmatpush1.msra.mxu0 %v1909
    %1944 = vmatprep.subr.mxu0 0.0
    %1945 = vmatpush1.msra.mxu0 %v1910
    %1946 = vmatprep.subr.mxu0 0.0
    %1947 = vmatpush1.msra.mxu0 %v1911
    %1948 = vmatprep.subr.mxu0 0.0
    %1949 = vmatpush1.msra.mxu0 %v1912
    %1950 = vmatprep.subr.mxu0 0.0
    %1951 = vmatpush1.msra.mxu0 %v1913
    %1952 = vmatprep.subr.mxu0 0.0
    %1953 = vmatpush1.msra.mxu0 %v1914
    %1954 = vmatprep.subr.mxu0 0.0
    %1955 = vmatpush1.msra.mxu0 0.0
    %1956 = vmatprep.subr.mxu0 0.0
    %1957 = vmatpush1.msra.mxu0 0.0
    %1958 = vmatprep.subr.mxu0 0.0
    %1959 = vmatpush1.msra.mxu0 0.0
    %1960 = vmatprep.subr.mxu0 0.0
    %1961 = vmatpush1.msra.mxu0 0.0
    %1962 = vmatprep.subr.mxu0 0.0
    %1963 = vmatpush1.msra.mxu0 0.0
    %1964 = vmatprep.subr.mxu0 0.0
    %1965 = vmatpush1.msra.mxu0 0.0
    %1966 = vmatprep.subr.mxu0 0.0
    %1967 = vmatpush1.msra.mxu0 0.0
    %1968 = vmatprep.subr.mxu0 0.0
    %1969 = vmatpush1.msra.mxu0 0.0
    %1970 = vmatprep.subr.mxu0 0.0
    %1971 = vmatpush1.msra.mxu0 0.0
    %1972 = vmatprep.subr.mxu0 0.0
    %1973 = vmatpush1.msra.mxu0 0.0
    %1974 = vmatprep.subr.mxu0 0.0
    %1975 = vmatpush1.msra.mxu0 0.0
    %1976 = vmatprep.subr.mxu0 0.0
    %1977 = vmatpush1.msra.mxu0 0.0
    %1978 = vmatprep.subr.mxu0 0.0
    %1979 = vmatpush1.msra.mxu0 0.0
    %1980 = vmatprep.subr.mxu0 0.0
    %1981 = vmatpush1.msra.mxu0 0.0
    %1982 = vmatprep.subr.mxu0 0.0
    %1983 = vmatpush1.msra.mxu0 0.0
    %1984 = vmatprep.subr.mxu0 0.0
    %1985 = vmatpush1.msra.mxu0 0.0
    %1986 = vmatprep.mubr.f32.mxu0 0.0
    %1987 = vmatmul.mubr.f32.gmra.mrb[0].mxu0 %v1898
    %v1988 = vpop.f32.mrb[0].mxu0
    %v1989 = vadd.f32 %v1920, %v1988
    %v1990 = vpop.f32.mrb[0].mxu0
    %1991 = vdwg.mxu0
    %1992 = vst [vmem:[#allocation7] sm:$0xff] %v1989
    // Predicated region
    $region38: #{tpu_custom_call.1} parent=1 // pred_check
      _
    $region39: #{tpu_custom_call.1} parent=1 // pred_check_branch
      %1994 = sbr.rel (0) target = $region41
    $region40: #{tpu_custom_call.1} parent=1 // pred_region
      %s1996 = ssub.s32 128, 128
      %1997 = vsyncadd [#allocation4], %s1996
      %s1999 = sshll.u32 [#allocation7], 4
      %s2000 = int_to_ptr.vmem [resolvable:$true] %s1999
      %2002 = dma.vmem_to_hbm [thread:$0]  %s2000, 128, %s7, [#allocation4]
    $region41: #{tpu_custom_call.1} parent=1 // pred_fallthru
      _
    // Predicated region
    $region42: #{tpu_custom_call.1} parent=1 // pred_check
      _
    $region43: #{tpu_custom_call.1} parent=1 // pred_check_branch
      %2004 = sbr.rel (0) target = $region45
    $region44: #{tpu_custom_call.1} parent=1 // pred_region
      %2005 = dma.done [#allocation4], 128
    $region45: #{tpu_custom_call.1} parent=1 // pred_fallthru
      _
    %2006 = vsyncpa [#allocation3], 1
    %2007 = vsyncpa [#allocation6], 1
    %2008 = vsyncpa [#allocation4], 1

</llo_original>
